<compile_context>
chip_gen: v7x
topology: tpu7x:2x2x1
jax: 0.10.0
libtpu: 0.0.40
codegen_flags: <defaults>
</compile_context>

<pallas_src>
import functools

import jax
import jax.numpy as jnp
from jax import lax
from jax.experimental import pallas as pl
from jax.experimental.pallas import tpu as pltpu

EPS = 1e-5


def _sigmoid(x):
    # sigmoid(x) = 0.5*(1 + tanh(x/2)): one EUP push instead of exp + recip.
    return 0.5 * jnp.tanh(0.5 * x) + 0.5


def _bn_scale_mean(z, gamma, inv_b):
    """Return (s, mean) with s = gamma * rsqrt(biased_var(z) + eps).

    Two-pass variance (E[(z-mean)^2]) for numerical robustness."""
    mean = jnp.sum(z, axis=0, keepdims=True) * inv_b
    d = z - mean
    var = jnp.sum(d * d, axis=0, keepdims=True) * inv_b
    s = gamma * lax.rsqrt(var + EPS)
    return s, mean


def bnlstm_seq_kernel(wi_ref, h0_ref, c0_ref, w_hh_ref, p4_ref, pc_ref,
                      hc_ref, h_scr, c_scr):
    tb = pl.program_id(0)

    # Load the initial state into the VMEM carry on the first time-block.
    @pl.when(tb == 0)
    def _():
        h_scr[...] = h0_ref[...]
        c_scr[...] = c0_ref[...]

    B = h_scr.shape[0]
    H = h_scr.shape[1]
    Tb = wi_ref.shape[0]
    inv_b = 1.0 / B

    # Packed params: rows = [gamma_ih, gamma_hh, bias + beta_ih + beta_hh].
    p4 = p4_ref[...]
    g_ih, g_hh, bias_comb = p4[0:1], p4[1:2], p4[2:3]        # each (1, 4H)
    pc = pc_ref[...]
    g_c, b_c = pc[0:1], pc[1:2]                              # each (1, H)

    w_hh = w_hh_ref[...]                                     # VMEM-resident

    def step(i, carry):
        h, c = carry
        wi = wi_ref[i]                                       # (B, 4H) streamed (x@W_ih hoisted)
        wh = jnp.dot(h, w_hh, preferred_element_type=jnp.float32)

        # Fused training-mode BN (batch stats): gates = wi*s_i + wh*s_h + shift
        s_i, m_i = _bn_scale_mean(wi, g_ih, inv_b)
        s_h, m_h = _bn_scale_mean(wh, g_hh, inv_b)
        shift = bias_comb - m_i * s_i - m_h * s_h            # (1, 4H)
        gates = wi * s_i + wh * s_h + shift                  # (B, 4H)

        f = gates[:, 0 * H:1 * H]
        ig = gates[:, 1 * H:2 * H]
        o = gates[:, 2 * H:3 * H]
        g = gates[:, 3 * H:4 * H]

        c1 = _sigmoid(f) * c + _sigmoid(ig) * jnp.tanh(g)
        s_c, m_c = _bn_scale_mean(c1, g_c, inv_b)
        h1 = _sigmoid(o) * jnp.tanh(c1 * s_c + (b_c - m_c * s_c))

        # Slice stores (no per-step concat temporary).  With H % 128 == 0
        # both halves are unmasked lane-dense vst.
        hc_ref[i, :, 0:H] = h1.astype(hc_ref.dtype)
        hc_ref[i, :, H:2 * H] = c1.astype(hc_ref.dtype)
        return h1, c1

    h_f, c_f = lax.fori_loop(0, Tb, step, (h_scr[...], c_scr[...]),
                             unroll=True if Tb <= 16 else 4)

    # Carry state to the next time-block.
    h_scr[...] = h_f
    c_scr[...] = c_f


def _pack_params(params):
    """Fold bias + BN betas and pack the small vectors into two arrays."""
    bias_comb = params["bias"] + params["b_ih"] + params["b_hh"]    # (1, 4H)
    p4 = jnp.concatenate([params["g_ih"], params["g_hh"], bias_comb], axis=0)
    pc = jnp.concatenate([params["g_c"], params["b_c"]], axis=0)
    return p4, pc


def _pick_time_block(T, B, H, budget_bytes=2 << 20):
    """Largest divisor of T whose streamed-in + out f32 blocks fit a small budget."""
    per_step = B * 6 * H * 4          # wi (4H) + hc (2H), f32
    tb = max(1, min(T, budget_bytes // max(per_step, 1)))
    while T % tb:
        tb -= 1
    return tb


@jax.jit
def bnlstm_sequence(x_seq, h0, c0, params):
    """Run the BN-LSTM cell over a whole sequence in ONE pallas_call.

    x_seq: (T, B, input_size); h0, c0: (B, H).
    Returns (h_seq, c_seq), each (T, B, H)."""
    T, B, D = x_seq.shape
    H = h0.shape[1]
    G = 4 * H
    p4, pc = _pack_params(params)

    # Hoist the input-path matmul out of the recurrence: one big MXU-friendly
    # (T*B, D) x (D, 4H) matmul instead of T tiny ones inside the loop.
    wi_seq = jnp.dot(x_seq.reshape(T * B, D), params["w_ih"],
                     preferred_element_type=jnp.float32).reshape(T, B, G)

    Tb = _pick_time_block(T, B, H)
    nblk = T // Tb

    cost = pl.CostEstimate(
        flops=int(2 * T * B * G * H + 24 * T * B * G),
        transcendentals=int(T * (B * 5 * H + 9 * H)),
        bytes_accessed=int(4 * (wi_seq.size + h0.size + c0.size
                                + params["w_hh"].size + p4.size + pc.size
                                + T * B * 2 * H)),
    )

    hc = pl.pallas_call(
        bnlstm_seq_kernel,
        out_shape=jax.ShapeDtypeStruct((T, B, 2 * H), jnp.float32),
        grid_spec=pltpu.PrefetchScalarGridSpec(
            num_scalar_prefetch=0,
            grid=(nblk,),
            in_specs=[
                pl.BlockSpec((Tb, B, G), lambda t: (t, 0, 0)),   # wi_t (streamed)
                pl.BlockSpec((B, H), lambda t: (0, 0)),          # h0   (resident)
                pl.BlockSpec((B, H), lambda t: (0, 0)),          # c0   (resident)
                pl.BlockSpec((H, G), lambda t: (0, 0)),          # W_hh (resident)
                pl.BlockSpec((3, G), lambda t: (0, 0)),          # packed gate params
                pl.BlockSpec((2, H), lambda t: (0, 0)),          # packed cell-BN params
            ],
            out_specs=pl.BlockSpec((Tb, B, 2 * H), lambda t: (t, 0, 0)),
            scratch_shapes=[pltpu.VMEM((B, H), jnp.float32),     # h carry
                            pltpu.VMEM((B, H), jnp.float32)],    # c carry
        ),
        compiler_params=pltpu.CompilerParams(
            dimension_semantics=("arbitrary",),   # time axis carries h/c state
            vmem_limit_bytes=48 * 1024 * 1024,    # fits v7x, > default scope on v5e/v6e
        ),
        cost_estimate=cost,
    )(wi_seq, h0, c0, params["w_hh"], p4, pc)

    return hc[:, :, :H], hc[:, :, H:]


@functools.partial(jax.jit, static_argnames=("timestep",))
def bnlstm_cell(x, h0, c0, params, timestep=0):
    """One BNLSTMCell.forward step (training mode). `timestep` is accepted for
    API parity but does not change the forward output (see header comment)."""
    del timestep
    h_seq, c_seq = bnlstm_sequence(x[None], h0, c0, params)
    return h_seq[0], c_seq[0]


def init_params(key, input_size, hidden_size):
    """Deterministic init matching BNLSTMCell.reset_parameters shapes/values."""
    H = hidden_size
    w_ih = jax.nn.initializers.orthogonal()(key, (input_size, 4 * H), jnp.float32)
    w_hh = jnp.concatenate([jnp.eye(H, dtype=jnp.float32)] * 4, axis=1)
    bias = jnp.zeros((1, 4 * H), jnp.float32)
    g_ih = jnp.full((1, 4 * H), 0.1, jnp.float32)
    b_ih = jnp.zeros((1, 4 * H), jnp.float32)
    g_hh = jnp.full((1, 4 * H), 0.1, jnp.float32)
    b_hh = jnp.zeros((1, 4 * H), jnp.float32)
    g_c = jnp.full((1, H), 0.1, jnp.float32)
    b_c = jnp.zeros((1, H), jnp.float32)
    return dict(w_ih=w_ih, w_hh=w_hh, bias=bias,
                g_ih=g_ih, b_ih=b_ih, g_hh=g_hh, b_hh=b_hh,
                g_c=g_c, b_c=b_c)


# ---------------- pure-JAX reference (PyTorch semantics) ----------------

def _batch_norm_ref(x, gamma, beta, eps):
    mean = jnp.mean(x, axis=0, keepdims=True)
    var = jnp.mean((x - mean) * (x - mean), axis=0, keepdims=True)
    return (x - mean) * lax.rsqrt(var + eps) * gamma + beta


def bnlstm_cell_ref(x, h0, c0, p):
    wi = x @ p["w_ih"]
    wh = h0 @ p["w_hh"]
    bn_wi = _batch_norm_ref(wi, p["g_ih"], p["b_ih"], EPS)
    bn_wh = _batch_norm_ref(wh, p["g_hh"], p["b_hh"], EPS)
    gates = bn_wh + bn_wi + p["bias"]
    H = h0.shape[1]
    f, i, o, g = (gates[:, k * H:(k + 1) * H] for k in range(4))
    c1 = jax.nn.sigmoid(f) * c0 + jax.nn.sigmoid(i) * jnp.tanh(g)
    h1 = jax.nn.sigmoid(o) * jnp.tanh(_batch_norm_ref(c1, p["g_c"], p["b_c"], EPS))
    return h1, c1


def bnlstm_sequence_ref(x_seq, h0, c0, p):
    hs, cs = [], []
    h, c = h0, c0
    for t in range(x_seq.shape[0]):
        h, c = bnlstm_cell_ref(x_seq[t], h, c, p)
        hs.append(h)
        cs.append(c)
    return jnp.stack(hs), jnp.stack(cs)


if __name__ == "__main__":
    B, INPUT, HIDDEN, T = 8, 16, 32, 8

    key = jax.random.PRNGKey(0)
    k_w, k_x, k_h, k_c = jax.random.split(key, 4)

    params = init_params(k_w, INPUT, HIDDEN)
    x_seq = jax.random.normal(k_x, (T, B, INPUT), jnp.float32)
    h0 = jax.random.normal(k_h, (B, HIDDEN), jnp.float32)
    c0 = jax.random.normal(k_c, (B, HIDDEN), jnp.float32)

    # Whole-sequence kernel: x-path matmul hoisted, time loop inside the kernel.
    h_seq, c_seq = bnlstm_sequence(x_seq, h0, c0, params)
    jax.block_until_ready((h_seq, c_seq))

    h_seq_ref, c_seq_ref = bnlstm_sequence_ref(x_seq, h0, c0, params)
    assert h_seq.shape == (T, B, HIDDEN) and c_seq.shape == (T, B, HIDDEN)
    assert jnp.allclose(h_seq, h_seq_ref, atol=2e-3, rtol=2e-3), \
        float(jnp.max(jnp.abs(h_seq - h_seq_ref)))
    assert jnp.allclose(c_seq, c_seq_ref, atol=2e-3, rtol=2e-3), \
        float(jnp.max(jnp.abs(c_seq - c_seq_ref)))

    # Single-step API (parity with BNLSTMCell.forward).
    h1, c1 = bnlstm_cell(x_seq[0], h0, c0, params, timestep=0)
    jax.block_until_ready((h1, c1))
    h1_ref, c1_ref = bnlstm_cell_ref(x_seq[0], h0, c0, params)
    assert jnp.allclose(h1, h1_ref, atol=2e-3, rtol=2e-3)
    assert jnp.allclose(c1, c1_ref, atol=2e-3, rtol=2e-3)

    print("KERNEL_OK")
</pallas_src>

<mosaic_0001>
module attributes {stable_mosaic.version = 11 : i64} {
  func.func @bnlstm_seq_kernel(%arg0: i32, %arg1: memref<8x8x128xf32, #tpu.memory_space<vmem>>, %arg2: memref<8x32xf32, #tpu.memory_space<vmem>>, %arg3: memref<8x32xf32, #tpu.memory_space<vmem>>, %arg4: memref<32x128xf32, #tpu.memory_space<vmem>>, %arg5: memref<3x128xf32, #tpu.memory_space<vmem>>, %arg6: memref<2x32xf32, #tpu.memory_space<vmem>>, %arg7: memref<8x8x64xf32, #tpu.memory_space<vmem>>, %arg8: memref<8x32xf32, #tpu.memory_space<vmem>>, %arg9: memref<8x32xf32, #tpu.memory_space<vmem>>) attributes {dimension_semantics = [#tpu.dimension_semantics<arbitrary>], iteration_bounds = array<i64: 1>, scalar_prefetch = 0 : i64, scratch_operands = 2 : i64, tpu.core_type = #tpu.core_type<tc>, window_params = [{transform_indices = @transform_0, window_bounds = array<i64: 8, 8, 128>}, {pipeline_mode = #tpu.pipeline_mode<synchronous>, transform_indices = @transform_1, window_bounds = array<i64: 8, 32>}, {pipeline_mode = #tpu.pipeline_mode<synchronous>, transform_indices = @transform_2, window_bounds = array<i64: 8, 32>}, {pipeline_mode = #tpu.pipeline_mode<synchronous>, transform_indices = @transform_3, window_bounds = array<i64: 32, 128>}, {pipeline_mode = #tpu.pipeline_mode<synchronous>, transform_indices = @transform_4, window_bounds = array<i64: 3, 128>}, {pipeline_mode = #tpu.pipeline_mode<synchronous>, transform_indices = @transform_5, window_bounds = array<i64: 2, 32>}, {transform_indices = @transform_6, window_bounds = array<i64: 8, 8, 64>}]} {
    %c0_i32 = arith.constant 0 : i32
    %0 = arith.cmpi eq, %arg0, %c0_i32 : i32
    %1 = arith.extui %0 : i1 to i32
    %c0_i32_0 = arith.constant 0 : i32
    %2 = arith.cmpi ne, %1, %c0_i32_0 : i32
    scf.if %2 {
      %c0_261 = arith.constant 0 : index
      %c0_262 = arith.constant 0 : index
      %855 = vector.load %arg2[%c0_261, %c0_262] : memref<8x32xf32, #tpu.memory_space<vmem>>, vector<8x32xf32>
      %c0_263 = arith.constant 0 : index
      %c0_264 = arith.constant 0 : index
      %856 = vector.load %arg8[%c0_263, %c0_264] : memref<8x32xf32, #tpu.memory_space<vmem>>, vector<8x32xf32>
      tpu.vector_store %arg8[%c0_263, %c0_264], %855 {strides = array<i32>} : memref<8x32xf32, #tpu.memory_space<vmem>>, vector<8x32xf32>,
      %c0_265 = arith.constant 0 : index
      %c0_266 = arith.constant 0 : index
      %857 = vector.load %arg3[%c0_265, %c0_266] : memref<8x32xf32, #tpu.memory_space<vmem>>, vector<8x32xf32>
      %c0_267 = arith.constant 0 : index
      %c0_268 = arith.constant 0 : index
      %858 = vector.load %arg9[%c0_267, %c0_268] : memref<8x32xf32, #tpu.memory_space<vmem>>, vector<8x32xf32>
      tpu.vector_store %arg9[%c0_267, %c0_268], %857 {strides = array<i32>} : memref<8x32xf32, #tpu.memory_space<vmem>>, vector<8x32xf32>,
    } else {
    }
    %c0 = arith.constant 0 : index
    %c0_1 = arith.constant 0 : index
    %3 = vector.load %arg5[%c0, %c0_1] : memref<3x128xf32, #tpu.memory_space<vmem>>, vector<3x128xf32>
    %4 = vector.extract_strided_slice %3 {offsets = [0, 0], sizes = [1, 128], strides = [1, 1]} : vector<3x128xf32> to vector<1x128xf32>
    %5 = vector.extract_strided_slice %3 {offsets = [1, 0], sizes = [1, 128], strides = [1, 1]} : vector<3x128xf32> to vector<1x128xf32>
    %6 = vector.extract_strided_slice %3 {offsets = [2, 0], sizes = [1, 128], strides = [1, 1]} : vector<3x128xf32> to vector<1x128xf32>
    %c0_2 = arith.constant 0 : index
    %c0_3 = arith.constant 0 : index
    %7 = vector.load %arg6[%c0_2, %c0_3] : memref<2x32xf32, #tpu.memory_space<vmem>>, vector<2x32xf32>
    %8 = vector.extract_strided_slice %7 {offsets = [0, 0], sizes = [1, 32], strides = [1, 1]} : vector<2x32xf32> to vector<1x32xf32>
    %9 = vector.extract_strided_slice %7 {offsets = [1, 0], sizes = [1, 32], strides = [1, 1]} : vector<2x32xf32> to vector<1x32xf32>
    %c0_4 = arith.constant 0 : index
    %c0_5 = arith.constant 0 : index
    %10 = vector.load %arg4[%c0_4, %c0_5] : memref<32x128xf32, #tpu.memory_space<vmem>>, vector<32x128xf32>
    %c0_6 = arith.constant 0 : index
    %c0_7 = arith.constant 0 : index
    %11 = vector.load %arg8[%c0_6, %c0_7] : memref<8x32xf32, #tpu.memory_space<vmem>>, vector<8x32xf32>
    %c0_8 = arith.constant 0 : index
    %c0_9 = arith.constant 0 : index
    %12 = vector.load %arg9[%c0_8, %c0_9] : memref<8x32xf32, #tpu.memory_space<vmem>>, vector<8x32xf32>
    %c0_i32_10 = arith.constant 0 : i32
    %13 = arith.index_cast %c0_i32_10 : i32 to index
    %c0_11 = arith.constant 0 : index
    %c0_12 = arith.constant 0 : index
    %14 = vector.load %arg1[%13, %c0_11, %c0_12] : memref<8x8x128xf32, #tpu.memory_space<vmem>>, vector<1x8x128xf32>
    %15 = vector.shape_cast %14 : vector<1x8x128xf32> to vector<8x128xf32>
    %cst = arith.constant dense<0.000000e+00> : vector<8x128xf32>
    %16 = tpu.matmul %11, %10, %cst {dimension_numbers = #tpu.dot_dimension_numbers<[1], [0], [0], [1], [0, 0, 1, 1], [], []>} : vector<8x32xf32>, vector<32x128xf32>, vector<8x128xf32> -> vector<8x128xf32>
    %cst_13 = arith.constant dense<0.000000e+00> : vector<128xf32>
    %17 = vector.multi_reduction <add>, %15, %cst_13 [0] : vector<8x128xf32> to vector<128xf32>
    %18 = vector.shape_cast %17 : vector<128xf32> to vector<1x128xf32>
    %cst_14 = arith.constant 1.250000e-01 : f32
    %19 = vector.broadcast %cst_14 : f32 to vector<1x128xf32>
    %20 = arith.mulf %18, %19 : vector<1x128xf32>
    %21 = vector.broadcast %20 : vector<1x128xf32> to vector<8x128xf32>
    %22 = arith.subf %15, %21 : vector<8x128xf32>
    %23 = arith.mulf %22, %22 : vector<8x128xf32>
    %cst_15 = arith.constant dense<0.000000e+00> : vector<128xf32>
    %24 = vector.multi_reduction <add>, %23, %cst_15 [0] : vector<8x128xf32> to vector<128xf32>
    %25 = vector.shape_cast %24 : vector<128xf32> to vector<1x128xf32>
    %cst_16 = arith.constant 1.250000e-01 : f32
    %26 = vector.broadcast %cst_16 : f32 to vector<1x128xf32>
    %27 = arith.mulf %25, %26 : vector<1x128xf32>
    %cst_17 = arith.constant 9.99999974E-6 : f32
    %28 = vector.broadcast %cst_17 : f32 to vector<1x128xf32>
    %29 = arith.addf %27, %28 : vector<1x128xf32>
    %30 = math.rsqrt %29 : vector<1x128xf32>
    %31 = arith.mulf %4, %30 : vector<1x128xf32>
    %cst_18 = arith.constant dense<0.000000e+00> : vector<128xf32>
    %32 = vector.multi_reduction <add>, %16, %cst_18 [0] : vector<8x128xf32> to vector<128xf32>
    %33 = vector.shape_cast %32 : vector<128xf32> to vector<1x128xf32>
    %cst_19 = arith.constant 1.250000e-01 : f32
    %34 = vector.broadcast %cst_19 : f32 to vector<1x128xf32>
    %35 = arith.mulf %33, %34 : vector<1x128xf32>
    %36 = vector.broadcast %35 : vector<1x128xf32> to vector<8x128xf32>
    %37 = arith.subf %16, %36 : vector<8x128xf32>
    %38 = arith.mulf %37, %37 : vector<8x128xf32>
    %cst_20 = arith.constant dense<0.000000e+00> : vector<128xf32>
    %39 = vector.multi_reduction <add>, %38, %cst_20 [0] : vector<8x128xf32> to vector<128xf32>
    %40 = vector.shape_cast %39 : vector<128xf32> to vector<1x128xf32>
    %cst_21 = arith.constant 1.250000e-01 : f32
    %41 = vector.broadcast %cst_21 : f32 to vector<1x128xf32>
    %42 = arith.mulf %40, %41 : vector<1x128xf32>
    %cst_22 = arith.constant 9.99999974E-6 : f32
    %43 = vector.broadcast %cst_22 : f32 to vector<1x128xf32>
    %44 = arith.addf %42, %43 : vector<1x128xf32>
    %45 = math.rsqrt %44 : vector<1x128xf32>
    %46 = arith.mulf %5, %45 : vector<1x128xf32>
    %47 = arith.mulf %20, %31 : vector<1x128xf32>
    %48 = arith.subf %6, %47 : vector<1x128xf32>
    %49 = arith.mulf %35, %46 : vector<1x128xf32>
    %50 = arith.subf %48, %49 : vector<1x128xf32>
    %51 = vector.broadcast %31 : vector<1x128xf32> to vector<8x128xf32>
    %52 = arith.mulf %15, %51 : vector<8x128xf32>
    %53 = vector.broadcast %46 : vector<1x128xf32> to vector<8x128xf32>
    %54 = arith.mulf %16, %53 : vector<8x128xf32>
    %55 = arith.addf %52, %54 : vector<8x128xf32>
    %56 = vector.broadcast %50 : vector<1x128xf32> to vector<8x128xf32>
    %57 = arith.addf %55, %56 : vector<8x128xf32>
    %58 = vector.extract_strided_slice %57 {offsets = [0, 0], sizes = [8, 32], strides = [1, 1]} : vector<8x128xf32> to vector<8x32xf32>
    %59 = vector.extract_strided_slice %57 {offsets = [0, 32], sizes = [8, 32], strides = [1, 1]} : vector<8x128xf32> to vector<8x32xf32>
    %60 = vector.extract_strided_slice %57 {offsets = [0, 64], sizes = [8, 32], strides = [1, 1]} : vector<8x128xf32> to vector<8x32xf32>
    %61 = vector.extract_strided_slice %57 {offsets = [0, 96], sizes = [8, 32], strides = [1, 1]} : vector<8x128xf32> to vector<8x32xf32>
    %cst_23 = arith.constant 5.000000e-01 : f32
    %62 = vector.broadcast %cst_23 : f32 to vector<8x32xf32>
    %63 = arith.mulf %62, %58 : vector<8x32xf32>
    %64 = math.tanh %63 : vector<8x32xf32>
    %cst_24 = arith.constant 5.000000e-01 : f32
    %65 = vector.broadcast %cst_24 : f32 to vector<8x32xf32>
    %66 = arith.mulf %65, %64 : vector<8x32xf32>
    %cst_25 = arith.constant 5.000000e-01 : f32
    %67 = vector.broadcast %cst_25 : f32 to vector<8x32xf32>
    %68 = arith.addf %66, %67 : vector<8x32xf32>
    %69 = arith.mulf %68, %12 : vector<8x32xf32>
    %cst_26 = arith.constant 5.000000e-01 : f32
    %70 = vector.broadcast %cst_26 : f32 to vector<8x32xf32>
    %71 = arith.mulf %70, %59 : vector<8x32xf32>
    %72 = math.tanh %71 : vector<8x32xf32>
    %cst_27 = arith.constant 5.000000e-01 : f32
    %73 = vector.broadcast %cst_27 : f32 to vector<8x32xf32>
    %74 = arith.mulf %73, %72 : vector<8x32xf32>
    %cst_28 = arith.constant 5.000000e-01 : f32
    %75 = vector.broadcast %cst_28 : f32 to vector<8x32xf32>
    %76 = arith.addf %74, %75 : vector<8x32xf32>
    %77 = math.tanh %61 : vector<8x32xf32>
    %78 = arith.mulf %76, %77 : vector<8x32xf32>
    %79 = arith.addf %69, %78 : vector<8x32xf32>
    %cst_29 = arith.constant dense<0.000000e+00> : vector<32xf32>
    %80 = vector.multi_reduction <add>, %79, %cst_29 [0] : vector<8x32xf32> to vector<32xf32>
    %81 = vector.shape_cast %80 : vector<32xf32> to vector<1x32xf32>
    %cst_30 = arith.constant 1.250000e-01 : f32
    %82 = vector.broadcast %cst_30 : f32 to vector<1x32xf32>
    %83 = arith.mulf %81, %82 : vector<1x32xf32>
    %84 = vector.broadcast %83 : vector<1x32xf32> to vector<8x32xf32>
    %85 = arith.subf %79, %84 : vector<8x32xf32>
    %86 = arith.mulf %85, %85 : vector<8x32xf32>
    %cst_31 = arith.constant dense<0.000000e+00> : vector<32xf32>
    %87 = vector.multi_reduction <add>, %86, %cst_31 [0] : vector<8x32xf32> to vector<32xf32>
    %88 = vector.shape_cast %87 : vector<32xf32> to vector<1x32xf32>
    %cst_32 = arith.constant 1.250000e-01 : f32
    %89 = vector.broadcast %cst_32 : f32 to vector<1x32xf32>
    %90 = arith.mulf %88, %89 : vector<1x32xf32>
    %cst_33 = arith.constant 9.99999974E-6 : f32
    %91 = vector.broadcast %cst_33 : f32 to vector<1x32xf32>
    %92 = arith.addf %90, %91 : vector<1x32xf32>
    %93 = math.rsqrt %92 : vector<1x32xf32>
    %94 = arith.mulf %8, %93 : vector<1x32xf32>
    %cst_34 = arith.constant 5.000000e-01 : f32
    %95 = vector.broadcast %cst_34 : f32 to vector<8x32xf32>
    %96 = arith.mulf %95, %60 : vector<8x32xf32>
    %97 = math.tanh %96 : vector<8x32xf32>
    %cst_35 = arith.constant 5.000000e-01 : f32
    %98 = vector.broadcast %cst_35 : f32 to vector<8x32xf32>
    %99 = arith.mulf %98, %97 : vector<8x32xf32>
    %cst_36 = arith.constant 5.000000e-01 : f32
    %100 = vector.broadcast %cst_36 : f32 to vector<8x32xf32>
    %101 = arith.addf %99, %100 : vector<8x32xf32>
    %102 = vector.broadcast %94 : vector<1x32xf32> to vector<8x32xf32>
    %103 = arith.mulf %79, %102 : vector<8x32xf32>
    %104 = arith.mulf %83, %94 : vector<1x32xf32>
    %105 = arith.subf %9, %104 : vector<1x32xf32>
    %106 = vector.broadcast %105 : vector<1x32xf32> to vector<8x32xf32>
    %107 = arith.addf %103, %106 : vector<8x32xf32>
    %108 = math.tanh %107 : vector<8x32xf32>
    %109 = arith.mulf %101, %108 : vector<8x32xf32>
    %110 = arith.index_cast %c0_i32_10 : i32 to index
    %c0_37 = arith.constant 0 : index
    %c0_38 = arith.constant 0 : index
    %111 = vector.load %arg7[%110, %c0_37, %c0_38] : memref<8x8x64xf32, #tpu.memory_space<vmem>>, vector<1x8x32xf32>
    %112 = vector.shape_cast %111 : vector<1x8x32xf32> to vector<8x32xf32>
    %113 = vector.shape_cast %109 : vector<8x32xf32> to vector<1x8x32xf32>
    tpu.vector_store %arg7[%110, %c0_37, %c0_38], %113 {strides = array<i32>} : memref<8x8x64xf32, #tpu.memory_space<vmem>>, vector<1x8x32xf32>,
    %114 = arith.index_cast %c0_i32_10 : i32 to index
    %c0_39 = arith.constant 0 : index
    %c32 = arith.constant 32 : index
    %115 = vector.load %arg7[%114, %c0_39, %c32] : memref<8x8x64xf32, #tpu.memory_space<vmem>>, vector<1x8x32xf32>
    %116 = vector.shape_cast %115 : vector<1x8x32xf32> to vector<8x32xf32>
    %117 = vector.shape_cast %79 : vector<8x32xf32> to vector<1x8x32xf32>
    tpu.vector_store %arg7[%114, %c0_39, %c32], %117 {strides = array<i32>} : memref<8x8x64xf32, #tpu.memory_space<vmem>>, vector<1x8x32xf32>,
    %c1_i32 = arith.constant 1 : i32
    %118 = arith.index_cast %c1_i32 : i32 to index
    %c0_40 = arith.constant 0 : index
    %c0_41 = arith.constant 0 : index
    %119 = vector.load %arg1[%118, %c0_40, %c0_41] : memref<8x8x128xf32, #tpu.memory_space<vmem>>, vector<1x8x128xf32>
    %120 = vector.shape_cast %119 : vector<1x8x128xf32> to vector<8x128xf32>
    %cst_42 = arith.constant dense<0.000000e+00> : vector<8x128xf32>
    %121 = tpu.matmul %109, %10, %cst_42 {dimension_numbers = #tpu.dot_dimension_numbers<[1], [0], [0], [1], [0, 0, 1, 1], [], []>} : vector<8x32xf32>, vector<32x128xf32>, vector<8x128xf32> -> vector<8x128xf32>
    %cst_43 = arith.constant dense<0.000000e+00> : vector<128xf32>
    %122 = vector.multi_reduction <add>, %120, %cst_43 [0] : vector<8x128xf32> to vector<128xf32>
    %123 = vector.shape_cast %122 : vector<128xf32> to vector<1x128xf32>
    %cst_44 = arith.constant 1.250000e-01 : f32
    %124 = vector.broadcast %cst_44 : f32 to vector<1x128xf32>
    %125 = arith.mulf %123, %124 : vector<1x128xf32>
    %126 = vector.broadcast %125 : vector<1x128xf32> to vector<8x128xf32>
    %127 = arith.subf %120, %126 : vector<8x128xf32>
    %128 = arith.mulf %127, %127 : vector<8x128xf32>
    %cst_45 = arith.constant dense<0.000000e+00> : vector<128xf32>
    %129 = vector.multi_reduction <add>, %128, %cst_45 [0] : vector<8x128xf32> to vector<128xf32>
    %130 = vector.shape_cast %129 : vector<128xf32> to vector<1x128xf32>
    %cst_46 = arith.constant 1.250000e-01 : f32
    %131 = vector.broadcast %cst_46 : f32 to vector<1x128xf32>
    %132 = arith.mulf %130, %131 : vector<1x128xf32>
    %cst_47 = arith.constant 9.99999974E-6 : f32
    %133 = vector.broadcast %cst_47 : f32 to vector<1x128xf32>
    %134 = arith.addf %132, %133 : vector<1x128xf32>
    %135 = math.rsqrt %134 : vector<1x128xf32>
    %136 = arith.mulf %4, %135 : vector<1x128xf32>
    %cst_48 = arith.constant dense<0.000000e+00> : vector<128xf32>
    %137 = vector.multi_reduction <add>, %121, %cst_48 [0] : vector<8x128xf32> to vector<128xf32>
    %138 = vector.shape_cast %137 : vector<128xf32> to vector<1x128xf32>
    %cst_49 = arith.constant 1.250000e-01 : f32
    %139 = vector.broadcast %cst_49 : f32 to vector<1x128xf32>
    %140 = arith.mulf %138, %139 : vector<1x128xf32>
    %141 = vector.broadcast %140 : vector<1x128xf32> to vector<8x128xf32>
    %142 = arith.subf %121, %141 : vector<8x128xf32>
    %143 = arith.mulf %142, %142 : vector<8x128xf32>
    %cst_50 = arith.constant dense<0.000000e+00> : vector<128xf32>
    %144 = vector.multi_reduction <add>, %143, %cst_50 [0] : vector<8x128xf32> to vector<128xf32>
    %145 = vector.shape_cast %144 : vector<128xf32> to vector<1x128xf32>
    %cst_51 = arith.constant 1.250000e-01 : f32
    %146 = vector.broadcast %cst_51 : f32 to vector<1x128xf32>
    %147 = arith.mulf %145, %146 : vector<1x128xf32>
    %cst_52 = arith.constant 9.99999974E-6 : f32
    %148 = vector.broadcast %cst_52 : f32 to vector<1x128xf32>
    %149 = arith.addf %147, %148 : vector<1x128xf32>
    %150 = math.rsqrt %149 : vector<1x128xf32>
    %151 = arith.mulf %5, %150 : vector<1x128xf32>
    %152 = arith.mulf %125, %136 : vector<1x128xf32>
    %153 = arith.subf %6, %152 : vector<1x128xf32>
    %154 = arith.mulf %140, %151 : vector<1x128xf32>
    %155 = arith.subf %153, %154 : vector<1x128xf32>
    %156 = vector.broadcast %136 : vector<1x128xf32> to vector<8x128xf32>
    %157 = arith.mulf %120, %156 : vector<8x128xf32>
    %158 = vector.broadcast %151 : vector<1x128xf32> to vector<8x128xf32>
    %159 = arith.mulf %121, %158 : vector<8x128xf32>
    %160 = arith.addf %157, %159 : vector<8x128xf32>
    %161 = vector.broadcast %155 : vector<1x128xf32> to vector<8x128xf32>
    %162 = arith.addf %160, %161 : vector<8x128xf32>
    %163 = vector.extract_strided_slice %162 {offsets = [0, 0], sizes = [8, 32], strides = [1, 1]} : vector<8x128xf32> to vector<8x32xf32>
    %164 = vector.extract_strided_slice %162 {offsets = [0, 32], sizes = [8, 32], strides = [1, 1]} : vector<8x128xf32> to vector<8x32xf32>
    %165 = vector.extract_strided_slice %162 {offsets = [0, 64], sizes = [8, 32], strides = [1, 1]} : vector<8x128xf32> to vector<8x32xf32>
    %166 = vector.extract_strided_slice %162 {offsets = [0, 96], sizes = [8, 32], strides = [1, 1]} : vector<8x128xf32> to vector<8x32xf32>
    %cst_53 = arith.constant 5.000000e-01 : f32
    %167 = vector.broadcast %cst_53 : f32 to vector<8x32xf32>
    %168 = arith.mulf %167, %163 : vector<8x32xf32>
    %169 = math.tanh %168 : vector<8x32xf32>
    %cst_54 = arith.constant 5.000000e-01 : f32
    %170 = vector.broadcast %cst_54 : f32 to vector<8x32xf32>
    %171 = arith.mulf %170, %169 : vector<8x32xf32>
    %cst_55 = arith.constant 5.000000e-01 : f32
    %172 = vector.broadcast %cst_55 : f32 to vector<8x32xf32>
    %173 = arith.addf %171, %172 : vector<8x32xf32>
    %174 = arith.mulf %173, %79 : vector<8x32xf32>
    %cst_56 = arith.constant 5.000000e-01 : f32
    %175 = vector.broadcast %cst_56 : f32 to vector<8x32xf32>
    %176 = arith.mulf %175, %164 : vector<8x32xf32>
    %177 = math.tanh %176 : vector<8x32xf32>
    %cst_57 = arith.constant 5.000000e-01 : f32
    %178 = vector.broadcast %cst_57 : f32 to vector<8x32xf32>
    %179 = arith.mulf %178, %177 : vector<8x32xf32>
    %cst_58 = arith.constant 5.000000e-01 : f32
    %180 = vector.broadcast %cst_58 : f32 to vector<8x32xf32>
    %181 = arith.addf %179, %180 : vector<8x32xf32>
    %182 = math.tanh %166 : vector<8x32xf32>
    %183 = arith.mulf %181, %182 : vector<8x32xf32>
    %184 = arith.addf %174, %183 : vector<8x32xf32>
    %cst_59 = arith.constant dense<0.000000e+00> : vector<32xf32>
    %185 = vector.multi_reduction <add>, %184, %cst_59 [0] : vector<8x32xf32> to vector<32xf32>
    %186 = vector.shape_cast %185 : vector<32xf32> to vector<1x32xf32>
    %cst_60 = arith.constant 1.250000e-01 : f32
    %187 = vector.broadcast %cst_60 : f32 to vector<1x32xf32>
    %188 = arith.mulf %186, %187 : vector<1x32xf32>
    %189 = vector.broadcast %188 : vector<1x32xf32> to vector<8x32xf32>
    %190 = arith.subf %184, %189 : vector<8x32xf32>
    %191 = arith.mulf %190, %190 : vector<8x32xf32>
    %cst_61 = arith.constant dense<0.000000e+00> : vector<32xf32>
    %192 = vector.multi_reduction <add>, %191, %cst_61 [0] : vector<8x32xf32> to vector<32xf32>
    %193 = vector.shape_cast %192 : vector<32xf32> to vector<1x32xf32>
    %cst_62 = arith.constant 1.250000e-01 : f32
    %194 = vector.broadcast %cst_62 : f32 to vector<1x32xf32>
    %195 = arith.mulf %193, %194 : vector<1x32xf32>
    %cst_63 = arith.constant 9.99999974E-6 : f32
    %196 = vector.broadcast %cst_63 : f32 to vector<1x32xf32>
    %197 = arith.addf %195, %196 : vector<1x32xf32>
    %198 = math.rsqrt %197 : vector<1x32xf32>
    %199 = arith.mulf %8, %198 : vector<1x32xf32>
    %cst_64 = arith.constant 5.000000e-01 : f32
    %200 = vector.broadcast %cst_64 : f32 to vector<8x32xf32>
    %201 = arith.mulf %200, %165 : vector<8x32xf32>
    %202 = math.tanh %201 : vector<8x32xf32>
    %cst_65 = arith.constant 5.000000e-01 : f32
    %203 = vector.broadcast %cst_65 : f32 to vector<8x32xf32>
    %204 = arith.mulf %203, %202 : vector<8x32xf32>
    %cst_66 = arith.constant 5.000000e-01 : f32
    %205 = vector.broadcast %cst_66 : f32 to vector<8x32xf32>
    %206 = arith.addf %204, %205 : vector<8x32xf32>
    %207 = vector.broadcast %199 : vector<1x32xf32> to vector<8x32xf32>
    %208 = arith.mulf %184, %207 : vector<8x32xf32>
    %209 = arith.mulf %188, %199 : vector<1x32xf32>
    %210 = arith.subf %9, %209 : vector<1x32xf32>
    %211 = vector.broadcast %210 : vector<1x32xf32> to vector<8x32xf32>
    %212 = arith.addf %208, %211 : vector<8x32xf32>
    %213 = math.tanh %212 : vector<8x32xf32>
    %214 = arith.mulf %206, %213 : vector<8x32xf32>
    %215 = arith.index_cast %c1_i32 : i32 to index
    %c0_67 = arith.constant 0 : index
    %c0_68 = arith.constant 0 : index
    %216 = vector.load %arg7[%215, %c0_67, %c0_68] : memref<8x8x64xf32, #tpu.memory_space<vmem>>, vector<1x8x32xf32>
    %217 = vector.shape_cast %216 : vector<1x8x32xf32> to vector<8x32xf32>
    %218 = vector.shape_cast %214 : vector<8x32xf32> to vector<1x8x32xf32>
    tpu.vector_store %arg7[%215, %c0_67, %c0_68], %218 {strides = array<i32>} : memref<8x8x64xf32, #tpu.memory_space<vmem>>, vector<1x8x32xf32>,
    %219 = arith.index_cast %c1_i32 : i32 to index
    %c0_69 = arith.constant 0 : index
    %c32_70 = arith.constant 32 : index
    %220 = vector.load %arg7[%219, %c0_69, %c32_70] : memref<8x8x64xf32, #tpu.memory_space<vmem>>, vector<1x8x32xf32>
    %221 = vector.shape_cast %220 : vector<1x8x32xf32> to vector<8x32xf32>
    %222 = vector.shape_cast %184 : vector<8x32xf32> to vector<1x8x32xf32>
    tpu.vector_store %arg7[%219, %c0_69, %c32_70], %222 {strides = array<i32>} : memref<8x8x64xf32, #tpu.memory_space<vmem>>, vector<1x8x32xf32>,
    %c2_i32 = arith.constant 2 : i32
    %223 = arith.index_cast %c2_i32 : i32 to index
    %c0_71 = arith.constant 0 : index
    %c0_72 = arith.constant 0 : index
    %224 = vector.load %arg1[%223, %c0_71, %c0_72] : memref<8x8x128xf32, #tpu.memory_space<vmem>>, vector<1x8x128xf32>
    %225 = vector.shape_cast %224 : vector<1x8x128xf32> to vector<8x128xf32>
    %cst_73 = arith.constant dense<0.000000e+00> : vector<8x128xf32>
    %226 = tpu.matmul %214, %10, %cst_73 {dimension_numbers = #tpu.dot_dimension_numbers<[1], [0], [0], [1], [0, 0, 1, 1], [], []>} : vector<8x32xf32>, vector<32x128xf32>, vector<8x128xf32> -> vector<8x128xf32>
    %cst_74 = arith.constant dense<0.000000e+00> : vector<128xf32>
    %227 = vector.multi_reduction <add>, %225, %cst_74 [0] : vector<8x128xf32> to vector<128xf32>
    %228 = vector.shape_cast %227 : vector<128xf32> to vector<1x128xf32>
    %cst_75 = arith.constant 1.250000e-01 : f32
    %229 = vector.broadcast %cst_75 : f32 to vector<1x128xf32>
    %230 = arith.mulf %228, %229 : vector<1x128xf32>
    %231 = vector.broadcast %230 : vector<1x128xf32> to vector<8x128xf32>
    %232 = arith.subf %225, %231 : vector<8x128xf32>
    %233 = arith.mulf %232, %232 : vector<8x128xf32>
    %cst_76 = arith.constant dense<0.000000e+00> : vector<128xf32>
    %234 = vector.multi_reduction <add>, %233, %cst_76 [0] : vector<8x128xf32> to vector<128xf32>
    %235 = vector.shape_cast %234 : vector<128xf32> to vector<1x128xf32>
    %cst_77 = arith.constant 1.250000e-01 : f32
    %236 = vector.broadcast %cst_77 : f32 to vector<1x128xf32>
    %237 = arith.mulf %235, %236 : vector<1x128xf32>
    %cst_78 = arith.constant 9.99999974E-6 : f32
    %238 = vector.broadcast %cst_78 : f32 to vector<1x128xf32>
    %239 = arith.addf %237, %238 : vector<1x128xf32>
    %240 = math.rsqrt %239 : vector<1x128xf32>
    %241 = arith.mulf %4, %240 : vector<1x128xf32>
    %cst_79 = arith.constant dense<0.000000e+00> : vector<128xf32>
    %242 = vector.multi_reduction <add>, %226, %cst_79 [0] : vector<8x128xf32> to vector<128xf32>
    %243 = vector.shape_cast %242 : vector<128xf32> to vector<1x128xf32>
    %cst_80 = arith.constant 1.250000e-01 : f32
    %244 = vector.broadcast %cst_80 : f32 to vector<1x128xf32>
    %245 = arith.mulf %243, %244 : vector<1x128xf32>
    %246 = vector.broadcast %245 : vector<1x128xf32> to vector<8x128xf32>
    %247 = arith.subf %226, %246 : vector<8x128xf32>
    %248 = arith.mulf %247, %247 : vector<8x128xf32>
    %cst_81 = arith.constant dense<0.000000e+00> : vector<128xf32>
    %249 = vector.multi_reduction <add>, %248, %cst_81 [0] : vector<8x128xf32> to vector<128xf32>
    %250 = vector.shape_cast %249 : vector<128xf32> to vector<1x128xf32>
    %cst_82 = arith.constant 1.250000e-01 : f32
    %251 = vector.broadcast %cst_82 : f32 to vector<1x128xf32>
    %252 = arith.mulf %250, %251 : vector<1x128xf32>
    %cst_83 = arith.constant 9.99999974E-6 : f32
    %253 = vector.broadcast %cst_83 : f32 to vector<1x128xf32>
    %254 = arith.addf %252, %253 : vector<1x128xf32>
    %255 = math.rsqrt %254 : vector<1x128xf32>
    %256 = arith.mulf %5, %255 : vector<1x128xf32>
    %257 = arith.mulf %230, %241 : vector<1x128xf32>
    %258 = arith.subf %6, %257 : vector<1x128xf32>
    %259 = arith.mulf %245, %256 : vector<1x128xf32>
    %260 = arith.subf %258, %259 : vector<1x128xf32>
    %261 = vector.broadcast %241 : vector<1x128xf32> to vector<8x128xf32>
    %262 = arith.mulf %225, %261 : vector<8x128xf32>
    %263 = vector.broadcast %256 : vector<1x128xf32> to vector<8x128xf32>
    %264 = arith.mulf %226, %263 : vector<8x128xf32>
    %265 = arith.addf %262, %264 : vector<8x128xf32>
    %266 = vector.broadcast %260 : vector<1x128xf32> to vector<8x128xf32>
    %267 = arith.addf %265, %266 : vector<8x128xf32>
    %268 = vector.extract_strided_slice %267 {offsets = [0, 0], sizes = [8, 32], strides = [1, 1]} : vector<8x128xf32> to vector<8x32xf32>
    %269 = vector.extract_strided_slice %267 {offsets = [0, 32], sizes = [8, 32], strides = [1, 1]} : vector<8x128xf32> to vector<8x32xf32>
    %270 = vector.extract_strided_slice %267 {offsets = [0, 64], sizes = [8, 32], strides = [1, 1]} : vector<8x128xf32> to vector<8x32xf32>
    %271 = vector.extract_strided_slice %267 {offsets = [0, 96], sizes = [8, 32], strides = [1, 1]} : vector<8x128xf32> to vector<8x32xf32>
    %cst_84 = arith.constant 5.000000e-01 : f32
    %272 = vector.broadcast %cst_84 : f32 to vector<8x32xf32>
    %273 = arith.mulf %272, %268 : vector<8x32xf32>
    %274 = math.tanh %273 : vector<8x32xf32>
    %cst_85 = arith.constant 5.000000e-01 : f32
    %275 = vector.broadcast %cst_85 : f32 to vector<8x32xf32>
    %276 = arith.mulf %275, %274 : vector<8x32xf32>
    %cst_86 = arith.constant 5.000000e-01 : f32
    %277 = vector.broadcast %cst_86 : f32 to vector<8x32xf32>
    %278 = arith.addf %276, %277 : vector<8x32xf32>
    %279 = arith.mulf %278, %184 : vector<8x32xf32>
    %cst_87 = arith.constant 5.000000e-01 : f32
    %280 = vector.broadcast %cst_87 : f32 to vector<8x32xf32>
    %281 = arith.mulf %280, %269 : vector<8x32xf32>
    %282 = math.tanh %281 : vector<8x32xf32>
    %cst_88 = arith.constant 5.000000e-01 : f32
    %283 = vector.broadcast %cst_88 : f32 to vector<8x32xf32>
    %284 = arith.mulf %283, %282 : vector<8x32xf32>
    %cst_89 = arith.constant 5.000000e-01 : f32
    %285 = vector.broadcast %cst_89 : f32 to vector<8x32xf32>
    %286 = arith.addf %284, %285 : vector<8x32xf32>
    %287 = math.tanh %271 : vector<8x32xf32>
    %288 = arith.mulf %286, %287 : vector<8x32xf32>
    %289 = arith.addf %279, %288 : vector<8x32xf32>
    %cst_90 = arith.constant dense<0.000000e+00> : vector<32xf32>
    %290 = vector.multi_reduction <add>, %289, %cst_90 [0] : vector<8x32xf32> to vector<32xf32>
    %291 = vector.shape_cast %290 : vector<32xf32> to vector<1x32xf32>
    %cst_91 = arith.constant 1.250000e-01 : f32
    %292 = vector.broadcast %cst_91 : f32 to vector<1x32xf32>
    %293 = arith.mulf %291, %292 : vector<1x32xf32>
    %294 = vector.broadcast %293 : vector<1x32xf32> to vector<8x32xf32>
    %295 = arith.subf %289, %294 : vector<8x32xf32>
    %296 = arith.mulf %295, %295 : vector<8x32xf32>
    %cst_92 = arith.constant dense<0.000000e+00> : vector<32xf32>
    %297 = vector.multi_reduction <add>, %296, %cst_92 [0] : vector<8x32xf32> to vector<32xf32>
    %298 = vector.shape_cast %297 : vector<32xf32> to vector<1x32xf32>
    %cst_93 = arith.constant 1.250000e-01 : f32
    %299 = vector.broadcast %cst_93 : f32 to vector<1x32xf32>
    %300 = arith.mulf %298, %299 : vector<1x32xf32>
    %cst_94 = arith.constant 9.99999974E-6 : f32
    %301 = vector.broadcast %cst_94 : f32 to vector<1x32xf32>
    %302 = arith.addf %300, %301 : vector<1x32xf32>
    %303 = math.rsqrt %302 : vector<1x32xf32>
    %304 = arith.mulf %8, %303 : vector<1x32xf32>
    %cst_95 = arith.constant 5.000000e-01 : f32
    %305 = vector.broadcast %cst_95 : f32 to vector<8x32xf32>
    %306 = arith.mulf %305, %270 : vector<8x32xf32>
    %307 = math.tanh %306 : vector<8x32xf32>
    %cst_96 = arith.constant 5.000000e-01 : f32
    %308 = vector.broadcast %cst_96 : f32 to vector<8x32xf32>
    %309 = arith.mulf %308, %307 : vector<8x32xf32>
    %cst_97 = arith.constant 5.000000e-01 : f32
    %310 = vector.broadcast %cst_97 : f32 to vector<8x32xf32>
    %311 = arith.addf %309, %310 : vector<8x32xf32>
    %312 = vector.broadcast %304 : vector<1x32xf32> to vector<8x32xf32>
    %313 = arith.mulf %289, %312 : vector<8x32xf32>
    %314 = arith.mulf %293, %304 : vector<1x32xf32>
    %315 = arith.subf %9, %314 : vector<1x32xf32>
    %316 = vector.broadcast %315 : vector<1x32xf32> to vector<8x32xf32>
    %317 = arith.addf %313, %316 : vector<8x32xf32>
    %318 = math.tanh %317 : vector<8x32xf32>
    %319 = arith.mulf %311, %318 : vector<8x32xf32>
    %320 = arith.index_cast %c2_i32 : i32 to index
    %c0_98 = arith.constant 0 : index
    %c0_99 = arith.constant 0 : index
    %321 = vector.load %arg7[%320, %c0_98, %c0_99] : memref<8x8x64xf32, #tpu.memory_space<vmem>>, vector<1x8x32xf32>
    %322 = vector.shape_cast %321 : vector<1x8x32xf32> to vector<8x32xf32>
    %323 = vector.shape_cast %319 : vector<8x32xf32> to vector<1x8x32xf32>
    tpu.vector_store %arg7[%320, %c0_98, %c0_99], %323 {strides = array<i32>} : memref<8x8x64xf32, #tpu.memory_space<vmem>>, vector<1x8x32xf32>,
    %324 = arith.index_cast %c2_i32 : i32 to index
    %c0_100 = arith.constant 0 : index
    %c32_101 = arith.constant 32 : index
    %325 = vector.load %arg7[%324, %c0_100, %c32_101] : memref<8x8x64xf32, #tpu.memory_space<vmem>>, vector<1x8x32xf32>
    %326 = vector.shape_cast %325 : vector<1x8x32xf32> to vector<8x32xf32>
    %327 = vector.shape_cast %289 : vector<8x32xf32> to vector<1x8x32xf32>
    tpu.vector_store %arg7[%324, %c0_100, %c32_101], %327 {strides = array<i32>} : memref<8x8x64xf32, #tpu.memory_space<vmem>>, vector<1x8x32xf32>,
    %c3_i32 = arith.constant 3 : i32
    %328 = arith.index_cast %c3_i32 : i32 to index
    %c0_102 = arith.constant 0 : index
    %c0_103 = arith.constant 0 : index
    %329 = vector.load %arg1[%328, %c0_102, %c0_103] : memref<8x8x128xf32, #tpu.memory_space<vmem>>, vector<1x8x128xf32>
    %330 = vector.shape_cast %329 : vector<1x8x128xf32> to vector<8x128xf32>
    %cst_104 = arith.constant dense<0.000000e+00> : vector<8x128xf32>
    %331 = tpu.matmul %319, %10, %cst_104 {dimension_numbers = #tpu.dot_dimension_numbers<[1], [0], [0], [1], [0, 0, 1, 1], [], []>} : vector<8x32xf32>, vector<32x128xf32>, vector<8x128xf32> -> vector<8x128xf32>
    %cst_105 = arith.constant dense<0.000000e+00> : vector<128xf32>
    %332 = vector.multi_reduction <add>, %330, %cst_105 [0] : vector<8x128xf32> to vector<128xf32>
    %333 = vector.shape_cast %332 : vector<128xf32> to vector<1x128xf32>
    %cst_106 = arith.constant 1.250000e-01 : f32
    %334 = vector.broadcast %cst_106 : f32 to vector<1x128xf32>
    %335 = arith.mulf %333, %334 : vector<1x128xf32>
    %336 = vector.broadcast %335 : vector<1x128xf32> to vector<8x128xf32>
    %337 = arith.subf %330, %336 : vector<8x128xf32>
    %338 = arith.mulf %337, %337 : vector<8x128xf32>
    %cst_107 = arith.constant dense<0.000000e+00> : vector<128xf32>
    %339 = vector.multi_reduction <add>, %338, %cst_107 [0] : vector<8x128xf32> to vector<128xf32>
    %340 = vector.shape_cast %339 : vector<128xf32> to vector<1x128xf32>
    %cst_108 = arith.constant 1.250000e-01 : f32
    %341 = vector.broadcast %cst_108 : f32 to vector<1x128xf32>
    %342 = arith.mulf %340, %341 : vector<1x128xf32>
    %cst_109 = arith.constant 9.99999974E-6 : f32
    %343 = vector.broadcast %cst_109 : f32 to vector<1x128xf32>
    %344 = arith.addf %342, %343 : vector<1x128xf32>
    %345 = math.rsqrt %344 : vector<1x128xf32>
    %346 = arith.mulf %4, %345 : vector<1x128xf32>
    %cst_110 = arith.constant dense<0.000000e+00> : vector<128xf32>
    %347 = vector.multi_reduction <add>, %331, %cst_110 [0] : vector<8x128xf32> to vector<128xf32>
    %348 = vector.shape_cast %347 : vector<128xf32> to vector<1x128xf32>
    %cst_111 = arith.constant 1.250000e-01 : f32
    %349 = vector.broadcast %cst_111 : f32 to vector<1x128xf32>
    %350 = arith.mulf %348, %349 : vector<1x128xf32>
    %351 = vector.broadcast %350 : vector<1x128xf32> to vector<8x128xf32>
    %352 = arith.subf %331, %351 : vector<8x128xf32>
    %353 = arith.mulf %352, %352 : vector<8x128xf32>
    %cst_112 = arith.constant dense<0.000000e+00> : vector<128xf32>
    %354 = vector.multi_reduction <add>, %353, %cst_112 [0] : vector<8x128xf32> to vector<128xf32>
    %355 = vector.shape_cast %354 : vector<128xf32> to vector<1x128xf32>
    %cst_113 = arith.constant 1.250000e-01 : f32
    %356 = vector.broadcast %cst_113 : f32 to vector<1x128xf32>
    %357 = arith.mulf %355, %356 : vector<1x128xf32>
    %cst_114 = arith.constant 9.99999974E-6 : f32
    %358 = vector.broadcast %cst_114 : f32 to vector<1x128xf32>
    %359 = arith.addf %357, %358 : vector<1x128xf32>
    %360 = math.rsqrt %359 : vector<1x128xf32>
    %361 = arith.mulf %5, %360 : vector<1x128xf32>
    %362 = arith.mulf %335, %346 : vector<1x128xf32>
    %363 = arith.subf %6, %362 : vector<1x128xf32>
    %364 = arith.mulf %350, %361 : vector<1x128xf32>
    %365 = arith.subf %363, %364 : vector<1x128xf32>
    %366 = vector.broadcast %346 : vector<1x128xf32> to vector<8x128xf32>
    %367 = arith.mulf %330, %366 : vector<8x128xf32>
    %368 = vector.broadcast %361 : vector<1x128xf32> to vector<8x128xf32>
    %369 = arith.mulf %331, %368 : vector<8x128xf32>
    %370 = arith.addf %367, %369 : vector<8x128xf32>
    %371 = vector.broadcast %365 : vector<1x128xf32> to vector<8x128xf32>
    %372 = arith.addf %370, %371 : vector<8x128xf32>
    %373 = vector.extract_strided_slice %372 {offsets = [0, 0], sizes = [8, 32], strides = [1, 1]} : vector<8x128xf32> to vector<8x32xf32>
    %374 = vector.extract_strided_slice %372 {offsets = [0, 32], sizes = [8, 32], strides = [1, 1]} : vector<8x128xf32> to vector<8x32xf32>
    %375 = vector.extract_strided_slice %372 {offsets = [0, 64], sizes = [8, 32], strides = [1, 1]} : vector<8x128xf32> to vector<8x32xf32>
    %376 = vector.extract_strided_slice %372 {offsets = [0, 96], sizes = [8, 32], strides = [1, 1]} : vector<8x128xf32> to vector<8x32xf32>
    %cst_115 = arith.constant 5.000000e-01 : f32
    %377 = vector.broadcast %cst_115 : f32 to vector<8x32xf32>
    %378 = arith.mulf %377, %373 : vector<8x32xf32>
    %379 = math.tanh %378 : vector<8x32xf32>
    %cst_116 = arith.constant 5.000000e-01 : f32
    %380 = vector.broadcast %cst_116 : f32 to vector<8x32xf32>
    %381 = arith.mulf %380, %379 : vector<8x32xf32>
    %cst_117 = arith.constant 5.000000e-01 : f32
    %382 = vector.broadcast %cst_117 : f32 to vector<8x32xf32>
    %383 = arith.addf %381, %382 : vector<8x32xf32>
    %384 = arith.mulf %383, %289 : vector<8x32xf32>
    %cst_118 = arith.constant 5.000000e-01 : f32
    %385 = vector.broadcast %cst_118 : f32 to vector<8x32xf32>
    %386 = arith.mulf %385, %374 : vector<8x32xf32>
    %387 = math.tanh %386 : vector<8x32xf32>
    %cst_119 = arith.constant 5.000000e-01 : f32
    %388 = vector.broadcast %cst_119 : f32 to vector<8x32xf32>
    %389 = arith.mulf %388, %387 : vector<8x32xf32>
    %cst_120 = arith.constant 5.000000e-01 : f32
    %390 = vector.broadcast %cst_120 : f32 to vector<8x32xf32>
    %391 = arith.addf %389, %390 : vector<8x32xf32>
    %392 = math.tanh %376 : vector<8x32xf32>
    %393 = arith.mulf %391, %392 : vector<8x32xf32>
    %394 = arith.addf %384, %393 : vector<8x32xf32>
    %cst_121 = arith.constant dense<0.000000e+00> : vector<32xf32>
    %395 = vector.multi_reduction <add>, %394, %cst_121 [0] : vector<8x32xf32> to vector<32xf32>
    %396 = vector.shape_cast %395 : vector<32xf32> to vector<1x32xf32>
    %cst_122 = arith.constant 1.250000e-01 : f32
    %397 = vector.broadcast %cst_122 : f32 to vector<1x32xf32>
    %398 = arith.mulf %396, %397 : vector<1x32xf32>
    %399 = vector.broadcast %398 : vector<1x32xf32> to vector<8x32xf32>
    %400 = arith.subf %394, %399 : vector<8x32xf32>
    %401 = arith.mulf %400, %400 : vector<8x32xf32>
    %cst_123 = arith.constant dense<0.000000e+00> : vector<32xf32>
    %402 = vector.multi_reduction <add>, %401, %cst_123 [0] : vector<8x32xf32> to vector<32xf32>
    %403 = vector.shape_cast %402 : vector<32xf32> to vector<1x32xf32>
    %cst_124 = arith.constant 1.250000e-01 : f32
    %404 = vector.broadcast %cst_124 : f32 to vector<1x32xf32>
    %405 = arith.mulf %403, %404 : vector<1x32xf32>
    %cst_125 = arith.constant 9.99999974E-6 : f32
    %406 = vector.broadcast %cst_125 : f32 to vector<1x32xf32>
    %407 = arith.addf %405, %406 : vector<1x32xf32>
    %408 = math.rsqrt %407 : vector<1x32xf32>
    %409 = arith.mulf %8, %408 : vector<1x32xf32>
    %cst_126 = arith.constant 5.000000e-01 : f32
    %410 = vector.broadcast %cst_126 : f32 to vector<8x32xf32>
    %411 = arith.mulf %410, %375 : vector<8x32xf32>
    %412 = math.tanh %411 : vector<8x32xf32>
    %cst_127 = arith.constant 5.000000e-01 : f32
    %413 = vector.broadcast %cst_127 : f32 to vector<8x32xf32>
    %414 = arith.mulf %413, %412 : vector<8x32xf32>
    %cst_128 = arith.constant 5.000000e-01 : f32
    %415 = vector.broadcast %cst_128 : f32 to vector<8x32xf32>
    %416 = arith.addf %414, %415 : vector<8x32xf32>
    %417 = vector.broadcast %409 : vector<1x32xf32> to vector<8x32xf32>
    %418 = arith.mulf %394, %417 : vector<8x32xf32>
    %419 = arith.mulf %398, %409 : vector<1x32xf32>
    %420 = arith.subf %9, %419 : vector<1x32xf32>
    %421 = vector.broadcast %420 : vector<1x32xf32> to vector<8x32xf32>
    %422 = arith.addf %418, %421 : vector<8x32xf32>
    %423 = math.tanh %422 : vector<8x32xf32>
    %424 = arith.mulf %416, %423 : vector<8x32xf32>
    %425 = arith.index_cast %c3_i32 : i32 to index
    %c0_129 = arith.constant 0 : index
    %c0_130 = arith.constant 0 : index
    %426 = vector.load %arg7[%425, %c0_129, %c0_130] : memref<8x8x64xf32, #tpu.memory_space<vmem>>, vector<1x8x32xf32>
    %427 = vector.shape_cast %426 : vector<1x8x32xf32> to vector<8x32xf32>
    %428 = vector.shape_cast %424 : vector<8x32xf32> to vector<1x8x32xf32>
    tpu.vector_store %arg7[%425, %c0_129, %c0_130], %428 {strides = array<i32>} : memref<8x8x64xf32, #tpu.memory_space<vmem>>, vector<1x8x32xf32>,
    %429 = arith.index_cast %c3_i32 : i32 to index
    %c0_131 = arith.constant 0 : index
    %c32_132 = arith.constant 32 : index
    %430 = vector.load %arg7[%429, %c0_131, %c32_132] : memref<8x8x64xf32, #tpu.memory_space<vmem>>, vector<1x8x32xf32>
    %431 = vector.shape_cast %430 : vector<1x8x32xf32> to vector<8x32xf32>
    %432 = vector.shape_cast %394 : vector<8x32xf32> to vector<1x8x32xf32>
    tpu.vector_store %arg7[%429, %c0_131, %c32_132], %432 {strides = array<i32>} : memref<8x8x64xf32, #tpu.memory_space<vmem>>, vector<1x8x32xf32>,
    %c4_i32 = arith.constant 4 : i32
    %433 = arith.index_cast %c4_i32 : i32 to index
    %c0_133 = arith.constant 0 : index
    %c0_134 = arith.constant 0 : index
    %434 = vector.load %arg1[%433, %c0_133, %c0_134] : memref<8x8x128xf32, #tpu.memory_space<vmem>>, vector<1x8x128xf32>
    %435 = vector.shape_cast %434 : vector<1x8x128xf32> to vector<8x128xf32>
    %cst_135 = arith.constant dense<0.000000e+00> : vector<8x128xf32>
    %436 = tpu.matmul %424, %10, %cst_135 {dimension_numbers = #tpu.dot_dimension_numbers<[1], [0], [0], [1], [0, 0, 1, 1], [], []>} : vector<8x32xf32>, vector<32x128xf32>, vector<8x128xf32> -> vector<8x128xf32>
    %cst_136 = arith.constant dense<0.000000e+00> : vector<128xf32>
    %437 = vector.multi_reduction <add>, %435, %cst_136 [0] : vector<8x128xf32> to vector<128xf32>
    %438 = vector.shape_cast %437 : vector<128xf32> to vector<1x128xf32>
    %cst_137 = arith.constant 1.250000e-01 : f32
    %439 = vector.broadcast %cst_137 : f32 to vector<1x128xf32>
    %440 = arith.mulf %438, %439 : vector<1x128xf32>
    %441 = vector.broadcast %440 : vector<1x128xf32> to vector<8x128xf32>
    %442 = arith.subf %435, %441 : vector<8x128xf32>
    %443 = arith.mulf %442, %442 : vector<8x128xf32>
    %cst_138 = arith.constant dense<0.000000e+00> : vector<128xf32>
    %444 = vector.multi_reduction <add>, %443, %cst_138 [0] : vector<8x128xf32> to vector<128xf32>
    %445 = vector.shape_cast %444 : vector<128xf32> to vector<1x128xf32>
    %cst_139 = arith.constant 1.250000e-01 : f32
    %446 = vector.broadcast %cst_139 : f32 to vector<1x128xf32>
    %447 = arith.mulf %445, %446 : vector<1x128xf32>
    %cst_140 = arith.constant 9.99999974E-6 : f32
    %448 = vector.broadcast %cst_140 : f32 to vector<1x128xf32>
    %449 = arith.addf %447, %448 : vector<1x128xf32>
    %450 = math.rsqrt %449 : vector<1x128xf32>
    %451 = arith.mulf %4, %450 : vector<1x128xf32>
    %cst_141 = arith.constant dense<0.000000e+00> : vector<128xf32>
    %452 = vector.multi_reduction <add>, %436, %cst_141 [0] : vector<8x128xf32> to vector<128xf32>
    %453 = vector.shape_cast %452 : vector<128xf32> to vector<1x128xf32>
    %cst_142 = arith.constant 1.250000e-01 : f32
    %454 = vector.broadcast %cst_142 : f32 to vector<1x128xf32>
    %455 = arith.mulf %453, %454 : vector<1x128xf32>
    %456 = vector.broadcast %455 : vector<1x128xf32> to vector<8x128xf32>
    %457 = arith.subf %436, %456 : vector<8x128xf32>
    %458 = arith.mulf %457, %457 : vector<8x128xf32>
    %cst_143 = arith.constant dense<0.000000e+00> : vector<128xf32>
    %459 = vector.multi_reduction <add>, %458, %cst_143 [0] : vector<8x128xf32> to vector<128xf32>
    %460 = vector.shape_cast %459 : vector<128xf32> to vector<1x128xf32>
    %cst_144 = arith.constant 1.250000e-01 : f32
    %461 = vector.broadcast %cst_144 : f32 to vector<1x128xf32>
    %462 = arith.mulf %460, %461 : vector<1x128xf32>
    %cst_145 = arith.constant 9.99999974E-6 : f32
    %463 = vector.broadcast %cst_145 : f32 to vector<1x128xf32>
    %464 = arith.addf %462, %463 : vector<1x128xf32>
    %465 = math.rsqrt %464 : vector<1x128xf32>
    %466 = arith.mulf %5, %465 : vector<1x128xf32>
    %467 = arith.mulf %440, %451 : vector<1x128xf32>
    %468 = arith.subf %6, %467 : vector<1x128xf32>
    %469 = arith.mulf %455, %466 : vector<1x128xf32>
    %470 = arith.subf %468, %469 : vector<1x128xf32>
    %471 = vector.broadcast %451 : vector<1x128xf32> to vector<8x128xf32>
    %472 = arith.mulf %435, %471 : vector<8x128xf32>
    %473 = vector.broadcast %466 : vector<1x128xf32> to vector<8x128xf32>
    %474 = arith.mulf %436, %473 : vector<8x128xf32>
    %475 = arith.addf %472, %474 : vector<8x128xf32>
    %476 = vector.broadcast %470 : vector<1x128xf32> to vector<8x128xf32>
    %477 = arith.addf %475, %476 : vector<8x128xf32>
    %478 = vector.extract_strided_slice %477 {offsets = [0, 0], sizes = [8, 32], strides = [1, 1]} : vector<8x128xf32> to vector<8x32xf32>
    %479 = vector.extract_strided_slice %477 {offsets = [0, 32], sizes = [8, 32], strides = [1, 1]} : vector<8x128xf32> to vector<8x32xf32>
    %480 = vector.extract_strided_slice %477 {offsets = [0, 64], sizes = [8, 32], strides = [1, 1]} : vector<8x128xf32> to vector<8x32xf32>
    %481 = vector.extract_strided_slice %477 {offsets = [0, 96], sizes = [8, 32], strides = [1, 1]} : vector<8x128xf32> to vector<8x32xf32>
    %cst_146 = arith.constant 5.000000e-01 : f32
    %482 = vector.broadcast %cst_146 : f32 to vector<8x32xf32>
    %483 = arith.mulf %482, %478 : vector<8x32xf32>
    %484 = math.tanh %483 : vector<8x32xf32>
    %cst_147 = arith.constant 5.000000e-01 : f32
    %485 = vector.broadcast %cst_147 : f32 to vector<8x32xf32>
    %486 = arith.mulf %485, %484 : vector<8x32xf32>
    %cst_148 = arith.constant 5.000000e-01 : f32
    %487 = vector.broadcast %cst_148 : f32 to vector<8x32xf32>
    %488 = arith.addf %486, %487 : vector<8x32xf32>
    %489 = arith.mulf %488, %394 : vector<8x32xf32>
    %cst_149 = arith.constant 5.000000e-01 : f32
    %490 = vector.broadcast %cst_149 : f32 to vector<8x32xf32>
    %491 = arith.mulf %490, %479 : vector<8x32xf32>
    %492 = math.tanh %491 : vector<8x32xf32>
    %cst_150 = arith.constant 5.000000e-01 : f32
    %493 = vector.broadcast %cst_150 : f32 to vector<8x32xf32>
    %494 = arith.mulf %493, %492 : vector<8x32xf32>
    %cst_151 = arith.constant 5.000000e-01 : f32
    %495 = vector.broadcast %cst_151 : f32 to vector<8x32xf32>
    %496 = arith.addf %494, %495 : vector<8x32xf32>
    %497 = math.tanh %481 : vector<8x32xf32>
    %498 = arith.mulf %496, %497 : vector<8x32xf32>
    %499 = arith.addf %489, %498 : vector<8x32xf32>
    %cst_152 = arith.constant dense<0.000000e+00> : vector<32xf32>
    %500 = vector.multi_reduction <add>, %499, %cst_152 [0] : vector<8x32xf32> to vector<32xf32>
    %501 = vector.shape_cast %500 : vector<32xf32> to vector<1x32xf32>
    %cst_153 = arith.constant 1.250000e-01 : f32
    %502 = vector.broadcast %cst_153 : f32 to vector<1x32xf32>
    %503 = arith.mulf %501, %502 : vector<1x32xf32>
    %504 = vector.broadcast %503 : vector<1x32xf32> to vector<8x32xf32>
    %505 = arith.subf %499, %504 : vector<8x32xf32>
    %506 = arith.mulf %505, %505 : vector<8x32xf32>
    %cst_154 = arith.constant dense<0.000000e+00> : vector<32xf32>
    %507 = vector.multi_reduction <add>, %506, %cst_154 [0] : vector<8x32xf32> to vector<32xf32>
    %508 = vector.shape_cast %507 : vector<32xf32> to vector<1x32xf32>
    %cst_155 = arith.constant 1.250000e-01 : f32
    %509 = vector.broadcast %cst_155 : f32 to vector<1x32xf32>
    %510 = arith.mulf %508, %509 : vector<1x32xf32>
    %cst_156 = arith.constant 9.99999974E-6 : f32
    %511 = vector.broadcast %cst_156 : f32 to vector<1x32xf32>
    %512 = arith.addf %510, %511 : vector<1x32xf32>
    %513 = math.rsqrt %512 : vector<1x32xf32>
    %514 = arith.mulf %8, %513 : vector<1x32xf32>
    %cst_157 = arith.constant 5.000000e-01 : f32
    %515 = vector.broadcast %cst_157 : f32 to vector<8x32xf32>
    %516 = arith.mulf %515, %480 : vector<8x32xf32>
    %517 = math.tanh %516 : vector<8x32xf32>
    %cst_158 = arith.constant 5.000000e-01 : f32
    %518 = vector.broadcast %cst_158 : f32 to vector<8x32xf32>
    %519 = arith.mulf %518, %517 : vector<8x32xf32>
    %cst_159 = arith.constant 5.000000e-01 : f32
    %520 = vector.broadcast %cst_159 : f32 to vector<8x32xf32>
    %521 = arith.addf %519, %520 : vector<8x32xf32>
    %522 = vector.broadcast %514 : vector<1x32xf32> to vector<8x32xf32>
    %523 = arith.mulf %499, %522 : vector<8x32xf32>
    %524 = arith.mulf %503, %514 : vector<1x32xf32>
    %525 = arith.subf %9, %524 : vector<1x32xf32>
    %526 = vector.broadcast %525 : vector<1x32xf32> to vector<8x32xf32>
    %527 = arith.addf %523, %526 : vector<8x32xf32>
    %528 = math.tanh %527 : vector<8x32xf32>
    %529 = arith.mulf %521, %528 : vector<8x32xf32>
    %530 = arith.index_cast %c4_i32 : i32 to index
    %c0_160 = arith.constant 0 : index
    %c0_161 = arith.constant 0 : index
    %531 = vector.load %arg7[%530, %c0_160, %c0_161] : memref<8x8x64xf32, #tpu.memory_space<vmem>>, vector<1x8x32xf32>
    %532 = vector.shape_cast %531 : vector<1x8x32xf32> to vector<8x32xf32>
    %533 = vector.shape_cast %529 : vector<8x32xf32> to vector<1x8x32xf32>
    tpu.vector_store %arg7[%530, %c0_160, %c0_161], %533 {strides = array<i32>} : memref<8x8x64xf32, #tpu.memory_space<vmem>>, vector<1x8x32xf32>,
    %534 = arith.index_cast %c4_i32 : i32 to index
    %c0_162 = arith.constant 0 : index
    %c32_163 = arith.constant 32 : index
    %535 = vector.load %arg7[%534, %c0_162, %c32_163] : memref<8x8x64xf32, #tpu.memory_space<vmem>>, vector<1x8x32xf32>
    %536 = vector.shape_cast %535 : vector<1x8x32xf32> to vector<8x32xf32>
    %537 = vector.shape_cast %499 : vector<8x32xf32> to vector<1x8x32xf32>
    tpu.vector_store %arg7[%534, %c0_162, %c32_163], %537 {strides = array<i32>} : memref<8x8x64xf32, #tpu.memory_space<vmem>>, vector<1x8x32xf32>,
    %c5_i32 = arith.constant 5 : i32
    %538 = arith.index_cast %c5_i32 : i32 to index
    %c0_164 = arith.constant 0 : index
    %c0_165 = arith.constant 0 : index
    %539 = vector.load %arg1[%538, %c0_164, %c0_165] : memref<8x8x128xf32, #tpu.memory_space<vmem>>, vector<1x8x128xf32>
    %540 = vector.shape_cast %539 : vector<1x8x128xf32> to vector<8x128xf32>
    %cst_166 = arith.constant dense<0.000000e+00> : vector<8x128xf32>
    %541 = tpu.matmul %529, %10, %cst_166 {dimension_numbers = #tpu.dot_dimension_numbers<[1], [0], [0], [1], [0, 0, 1, 1], [], []>} : vector<8x32xf32>, vector<32x128xf32>, vector<8x128xf32> -> vector<8x128xf32>
    %cst_167 = arith.constant dense<0.000000e+00> : vector<128xf32>
    %542 = vector.multi_reduction <add>, %540, %cst_167 [0] : vector<8x128xf32> to vector<128xf32>
    %543 = vector.shape_cast %542 : vector<128xf32> to vector<1x128xf32>
    %cst_168 = arith.constant 1.250000e-01 : f32
    %544 = vector.broadcast %cst_168 : f32 to vector<1x128xf32>
    %545 = arith.mulf %543, %544 : vector<1x128xf32>
    %546 = vector.broadcast %545 : vector<1x128xf32> to vector<8x128xf32>
    %547 = arith.subf %540, %546 : vector<8x128xf32>
    %548 = arith.mulf %547, %547 : vector<8x128xf32>
    %cst_169 = arith.constant dense<0.000000e+00> : vector<128xf32>
    %549 = vector.multi_reduction <add>, %548, %cst_169 [0] : vector<8x128xf32> to vector<128xf32>
    %550 = vector.shape_cast %549 : vector<128xf32> to vector<1x128xf32>
    %cst_170 = arith.constant 1.250000e-01 : f32
    %551 = vector.broadcast %cst_170 : f32 to vector<1x128xf32>
    %552 = arith.mulf %550, %551 : vector<1x128xf32>
    %cst_171 = arith.constant 9.99999974E-6 : f32
    %553 = vector.broadcast %cst_171 : f32 to vector<1x128xf32>
    %554 = arith.addf %552, %553 : vector<1x128xf32>
    %555 = math.rsqrt %554 : vector<1x128xf32>
    %556 = arith.mulf %4, %555 : vector<1x128xf32>
    %cst_172 = arith.constant dense<0.000000e+00> : vector<128xf32>
    %557 = vector.multi_reduction <add>, %541, %cst_172 [0] : vector<8x128xf32> to vector<128xf32>
    %558 = vector.shape_cast %557 : vector<128xf32> to vector<1x128xf32>
    %cst_173 = arith.constant 1.250000e-01 : f32
    %559 = vector.broadcast %cst_173 : f32 to vector<1x128xf32>
    %560 = arith.mulf %558, %559 : vector<1x128xf32>
    %561 = vector.broadcast %560 : vector<1x128xf32> to vector<8x128xf32>
    %562 = arith.subf %541, %561 : vector<8x128xf32>
    %563 = arith.mulf %562, %562 : vector<8x128xf32>
    %cst_174 = arith.constant dense<0.000000e+00> : vector<128xf32>
    %564 = vector.multi_reduction <add>, %563, %cst_174 [0] : vector<8x128xf32> to vector<128xf32>
    %565 = vector.shape_cast %564 : vector<128xf32> to vector<1x128xf32>
    %cst_175 = arith.constant 1.250000e-01 : f32
    %566 = vector.broadcast %cst_175 : f32 to vector<1x128xf32>
    %567 = arith.mulf %565, %566 : vector<1x128xf32>
    %cst_176 = arith.constant 9.99999974E-6 : f32
    %568 = vector.broadcast %cst_176 : f32 to vector<1x128xf32>
    %569 = arith.addf %567, %568 : vector<1x128xf32>
    %570 = math.rsqrt %569 : vector<1x128xf32>
    %571 = arith.mulf %5, %570 : vector<1x128xf32>
    %572 = arith.mulf %545, %556 : vector<1x128xf32>
    %573 = arith.subf %6, %572 : vector<1x128xf32>
    %574 = arith.mulf %560, %571 : vector<1x128xf32>
    %575 = arith.subf %573, %574 : vector<1x128xf32>
    %576 = vector.broadcast %556 : vector<1x128xf32> to vector<8x128xf32>
    %577 = arith.mulf %540, %576 : vector<8x128xf32>
    %578 = vector.broadcast %571 : vector<1x128xf32> to vector<8x128xf32>
    %579 = arith.mulf %541, %578 : vector<8x128xf32>
    %580 = arith.addf %577, %579 : vector<8x128xf32>
    %581 = vector.broadcast %575 : vector<1x128xf32> to vector<8x128xf32>
    %582 = arith.addf %580, %581 : vector<8x128xf32>
    %583 = vector.extract_strided_slice %582 {offsets = [0, 0], sizes = [8, 32], strides = [1, 1]} : vector<8x128xf32> to vector<8x32xf32>
    %584 = vector.extract_strided_slice %582 {offsets = [0, 32], sizes = [8, 32], strides = [1, 1]} : vector<8x128xf32> to vector<8x32xf32>
    %585 = vector.extract_strided_slice %582 {offsets = [0, 64], sizes = [8, 32], strides = [1, 1]} : vector<8x128xf32> to vector<8x32xf32>
    %586 = vector.extract_strided_slice %582 {offsets = [0, 96], sizes = [8, 32], strides = [1, 1]} : vector<8x128xf32> to vector<8x32xf32>
    %cst_177 = arith.constant 5.000000e-01 : f32
    %587 = vector.broadcast %cst_177 : f32 to vector<8x32xf32>
    %588 = arith.mulf %587, %583 : vector<8x32xf32>
    %589 = math.tanh %588 : vector<8x32xf32>
    %cst_178 = arith.constant 5.000000e-01 : f32
    %590 = vector.broadcast %cst_178 : f32 to vector<8x32xf32>
    %591 = arith.mulf %590, %589 : vector<8x32xf32>
    %cst_179 = arith.constant 5.000000e-01 : f32
    %592 = vector.broadcast %cst_179 : f32 to vector<8x32xf32>
    %593 = arith.addf %591, %592 : vector<8x32xf32>
    %594 = arith.mulf %593, %499 : vector<8x32xf32>
    %cst_180 = arith.constant 5.000000e-01 : f32
    %595 = vector.broadcast %cst_180 : f32 to vector<8x32xf32>
    %596 = arith.mulf %595, %584 : vector<8x32xf32>
    %597 = math.tanh %596 : vector<8x32xf32>
    %cst_181 = arith.constant 5.000000e-01 : f32
    %598 = vector.broadcast %cst_181 : f32 to vector<8x32xf32>
    %599 = arith.mulf %598, %597 : vector<8x32xf32>
    %cst_182 = arith.constant 5.000000e-01 : f32
    %600 = vector.broadcast %cst_182 : f32 to vector<8x32xf32>
    %601 = arith.addf %599, %600 : vector<8x32xf32>
    %602 = math.tanh %586 : vector<8x32xf32>
    %603 = arith.mulf %601, %602 : vector<8x32xf32>
    %604 = arith.addf %594, %603 : vector<8x32xf32>
    %cst_183 = arith.constant dense<0.000000e+00> : vector<32xf32>
    %605 = vector.multi_reduction <add>, %604, %cst_183 [0] : vector<8x32xf32> to vector<32xf32>
    %606 = vector.shape_cast %605 : vector<32xf32> to vector<1x32xf32>
    %cst_184 = arith.constant 1.250000e-01 : f32
    %607 = vector.broadcast %cst_184 : f32 to vector<1x32xf32>
    %608 = arith.mulf %606, %607 : vector<1x32xf32>
    %609 = vector.broadcast %608 : vector<1x32xf32> to vector<8x32xf32>
    %610 = arith.subf %604, %609 : vector<8x32xf32>
    %611 = arith.mulf %610, %610 : vector<8x32xf32>
    %cst_185 = arith.constant dense<0.000000e+00> : vector<32xf32>
    %612 = vector.multi_reduction <add>, %611, %cst_185 [0] : vector<8x32xf32> to vector<32xf32>
    %613 = vector.shape_cast %612 : vector<32xf32> to vector<1x32xf32>
    %cst_186 = arith.constant 1.250000e-01 : f32
    %614 = vector.broadcast %cst_186 : f32 to vector<1x32xf32>
    %615 = arith.mulf %613, %614 : vector<1x32xf32>
    %cst_187 = arith.constant 9.99999974E-6 : f32
    %616 = vector.broadcast %cst_187 : f32 to vector<1x32xf32>
    %617 = arith.addf %615, %616 : vector<1x32xf32>
    %618 = math.rsqrt %617 : vector<1x32xf32>
    %619 = arith.mulf %8, %618 : vector<1x32xf32>
    %cst_188 = arith.constant 5.000000e-01 : f32
    %620 = vector.broadcast %cst_188 : f32 to vector<8x32xf32>
    %621 = arith.mulf %620, %585 : vector<8x32xf32>
    %622 = math.tanh %621 : vector<8x32xf32>
    %cst_189 = arith.constant 5.000000e-01 : f32
    %623 = vector.broadcast %cst_189 : f32 to vector<8x32xf32>
    %624 = arith.mulf %623, %622 : vector<8x32xf32>
    %cst_190 = arith.constant 5.000000e-01 : f32
    %625 = vector.broadcast %cst_190 : f32 to vector<8x32xf32>
    %626 = arith.addf %624, %625 : vector<8x32xf32>
    %627 = vector.broadcast %619 : vector<1x32xf32> to vector<8x32xf32>
    %628 = arith.mulf %604, %627 : vector<8x32xf32>
    %629 = arith.mulf %608, %619 : vector<1x32xf32>
    %630 = arith.subf %9, %629 : vector<1x32xf32>
    %631 = vector.broadcast %630 : vector<1x32xf32> to vector<8x32xf32>
    %632 = arith.addf %628, %631 : vector<8x32xf32>
    %633 = math.tanh %632 : vector<8x32xf32>
    %634 = arith.mulf %626, %633 : vector<8x32xf32>
    %635 = arith.index_cast %c5_i32 : i32 to index
    %c0_191 = arith.constant 0 : index
    %c0_192 = arith.constant 0 : index
    %636 = vector.load %arg7[%635, %c0_191, %c0_192] : memref<8x8x64xf32, #tpu.memory_space<vmem>>, vector<1x8x32xf32>
    %637 = vector.shape_cast %636 : vector<1x8x32xf32> to vector<8x32xf32>
    %638 = vector.shape_cast %634 : vector<8x32xf32> to vector<1x8x32xf32>
    tpu.vector_store %arg7[%635, %c0_191, %c0_192], %638 {strides = array<i32>} : memref<8x8x64xf32, #tpu.memory_space<vmem>>, vector<1x8x32xf32>,
    %639 = arith.index_cast %c5_i32 : i32 to index
    %c0_193 = arith.constant 0 : index
    %c32_194 = arith.constant 32 : index
    %640 = vector.load %arg7[%639, %c0_193, %c32_194] : memref<8x8x64xf32, #tpu.memory_space<vmem>>, vector<1x8x32xf32>
    %641 = vector.shape_cast %640 : vector<1x8x32xf32> to vector<8x32xf32>
    %642 = vector.shape_cast %604 : vector<8x32xf32> to vector<1x8x32xf32>
    tpu.vector_store %arg7[%639, %c0_193, %c32_194], %642 {strides = array<i32>} : memref<8x8x64xf32, #tpu.memory_space<vmem>>, vector<1x8x32xf32>,
    %c6_i32 = arith.constant 6 : i32
    %643 = arith.index_cast %c6_i32 : i32 to index
    %c0_195 = arith.constant 0 : index
    %c0_196 = arith.constant 0 : index
    %644 = vector.load %arg1[%643, %c0_195, %c0_196] : memref<8x8x128xf32, #tpu.memory_space<vmem>>, vector<1x8x128xf32>
    %645 = vector.shape_cast %644 : vector<1x8x128xf32> to vector<8x128xf32>
    %cst_197 = arith.constant dense<0.000000e+00> : vector<8x128xf32>
    %646 = tpu.matmul %634, %10, %cst_197 {dimension_numbers = #tpu.dot_dimension_numbers<[1], [0], [0], [1], [0, 0, 1, 1], [], []>} : vector<8x32xf32>, vector<32x128xf32>, vector<8x128xf32> -> vector<8x128xf32>
    %cst_198 = arith.constant dense<0.000000e+00> : vector<128xf32>
    %647 = vector.multi_reduction <add>, %645, %cst_198 [0] : vector<8x128xf32> to vector<128xf32>
    %648 = vector.shape_cast %647 : vector<128xf32> to vector<1x128xf32>
    %cst_199 = arith.constant 1.250000e-01 : f32
    %649 = vector.broadcast %cst_199 : f32 to vector<1x128xf32>
    %650 = arith.mulf %648, %649 : vector<1x128xf32>
    %651 = vector.broadcast %650 : vector<1x128xf32> to vector<8x128xf32>
    %652 = arith.subf %645, %651 : vector<8x128xf32>
    %653 = arith.mulf %652, %652 : vector<8x128xf32>
    %cst_200 = arith.constant dense<0.000000e+00> : vector<128xf32>
    %654 = vector.multi_reduction <add>, %653, %cst_200 [0] : vector<8x128xf32> to vector<128xf32>
    %655 = vector.shape_cast %654 : vector<128xf32> to vector<1x128xf32>
    %cst_201 = arith.constant 1.250000e-01 : f32
    %656 = vector.broadcast %cst_201 : f32 to vector<1x128xf32>
    %657 = arith.mulf %655, %656 : vector<1x128xf32>
    %cst_202 = arith.constant 9.99999974E-6 : f32
    %658 = vector.broadcast %cst_202 : f32 to vector<1x128xf32>
    %659 = arith.addf %657, %658 : vector<1x128xf32>
    %660 = math.rsqrt %659 : vector<1x128xf32>
    %661 = arith.mulf %4, %660 : vector<1x128xf32>
    %cst_203 = arith.constant dense<0.000000e+00> : vector<128xf32>
    %662 = vector.multi_reduction <add>, %646, %cst_203 [0] : vector<8x128xf32> to vector<128xf32>
    %663 = vector.shape_cast %662 : vector<128xf32> to vector<1x128xf32>
    %cst_204 = arith.constant 1.250000e-01 : f32
    %664 = vector.broadcast %cst_204 : f32 to vector<1x128xf32>
    %665 = arith.mulf %663, %664 : vector<1x128xf32>
    %666 = vector.broadcast %665 : vector<1x128xf32> to vector<8x128xf32>
    %667 = arith.subf %646, %666 : vector<8x128xf32>
    %668 = arith.mulf %667, %667 : vector<8x128xf32>
    %cst_205 = arith.constant dense<0.000000e+00> : vector<128xf32>
    %669 = vector.multi_reduction <add>, %668, %cst_205 [0] : vector<8x128xf32> to vector<128xf32>
    %670 = vector.shape_cast %669 : vector<128xf32> to vector<1x128xf32>
    %cst_206 = arith.constant 1.250000e-01 : f32
    %671 = vector.broadcast %cst_206 : f32 to vector<1x128xf32>
    %672 = arith.mulf %670, %671 : vector<1x128xf32>
    %cst_207 = arith.constant 9.99999974E-6 : f32
    %673 = vector.broadcast %cst_207 : f32 to vector<1x128xf32>
    %674 = arith.addf %672, %673 : vector<1x128xf32>
    %675 = math.rsqrt %674 : vector<1x128xf32>
    %676 = arith.mulf %5, %675 : vector<1x128xf32>
    %677 = arith.mulf %650, %661 : vector<1x128xf32>
    %678 = arith.subf %6, %677 : vector<1x128xf32>
    %679 = arith.mulf %665, %676 : vector<1x128xf32>
    %680 = arith.subf %678, %679 : vector<1x128xf32>
    %681 = vector.broadcast %661 : vector<1x128xf32> to vector<8x128xf32>
    %682 = arith.mulf %645, %681 : vector<8x128xf32>
    %683 = vector.broadcast %676 : vector<1x128xf32> to vector<8x128xf32>
    %684 = arith.mulf %646, %683 : vector<8x128xf32>
    %685 = arith.addf %682, %684 : vector<8x128xf32>
    %686 = vector.broadcast %680 : vector<1x128xf32> to vector<8x128xf32>
    %687 = arith.addf %685, %686 : vector<8x128xf32>
    %688 = vector.extract_strided_slice %687 {offsets = [0, 0], sizes = [8, 32], strides = [1, 1]} : vector<8x128xf32> to vector<8x32xf32>
    %689 = vector.extract_strided_slice %687 {offsets = [0, 32], sizes = [8, 32], strides = [1, 1]} : vector<8x128xf32> to vector<8x32xf32>
    %690 = vector.extract_strided_slice %687 {offsets = [0, 64], sizes = [8, 32], strides = [1, 1]} : vector<8x128xf32> to vector<8x32xf32>
    %691 = vector.extract_strided_slice %687 {offsets = [0, 96], sizes = [8, 32], strides = [1, 1]} : vector<8x128xf32> to vector<8x32xf32>
    %cst_208 = arith.constant 5.000000e-01 : f32
    %692 = vector.broadcast %cst_208 : f32 to vector<8x32xf32>
    %693 = arith.mulf %692, %688 : vector<8x32xf32>
    %694 = math.tanh %693 : vector<8x32xf32>
    %cst_209 = arith.constant 5.000000e-01 : f32
    %695 = vector.broadcast %cst_209 : f32 to vector<8x32xf32>
    %696 = arith.mulf %695, %694 : vector<8x32xf32>
    %cst_210 = arith.constant 5.000000e-01 : f32
    %697 = vector.broadcast %cst_210 : f32 to vector<8x32xf32>
    %698 = arith.addf %696, %697 : vector<8x32xf32>
    %699 = arith.mulf %698, %604 : vector<8x32xf32>
    %cst_211 = arith.constant 5.000000e-01 : f32
    %700 = vector.broadcast %cst_211 : f32 to vector<8x32xf32>
    %701 = arith.mulf %700, %689 : vector<8x32xf32>
    %702 = math.tanh %701 : vector<8x32xf32>
    %cst_212 = arith.constant 5.000000e-01 : f32
    %703 = vector.broadcast %cst_212 : f32 to vector<8x32xf32>
    %704 = arith.mulf %703, %702 : vector<8x32xf32>
    %cst_213 = arith.constant 5.000000e-01 : f32
    %705 = vector.broadcast %cst_213 : f32 to vector<8x32xf32>
    %706 = arith.addf %704, %705 : vector<8x32xf32>
    %707 = math.tanh %691 : vector<8x32xf32>
    %708 = arith.mulf %706, %707 : vector<8x32xf32>
    %709 = arith.addf %699, %708 : vector<8x32xf32>
    %cst_214 = arith.constant dense<0.000000e+00> : vector<32xf32>
    %710 = vector.multi_reduction <add>, %709, %cst_214 [0] : vector<8x32xf32> to vector<32xf32>
    %711 = vector.shape_cast %710 : vector<32xf32> to vector<1x32xf32>
    %cst_215 = arith.constant 1.250000e-01 : f32
    %712 = vector.broadcast %cst_215 : f32 to vector<1x32xf32>
    %713 = arith.mulf %711, %712 : vector<1x32xf32>
    %714 = vector.broadcast %713 : vector<1x32xf32> to vector<8x32xf32>
    %715 = arith.subf %709, %714 : vector<8x32xf32>
    %716 = arith.mulf %715, %715 : vector<8x32xf32>
    %cst_216 = arith.constant dense<0.000000e+00> : vector<32xf32>
    %717 = vector.multi_reduction <add>, %716, %cst_216 [0] : vector<8x32xf32> to vector<32xf32>
    %718 = vector.shape_cast %717 : vector<32xf32> to vector<1x32xf32>
    %cst_217 = arith.constant 1.250000e-01 : f32
    %719 = vector.broadcast %cst_217 : f32 to vector<1x32xf32>
    %720 = arith.mulf %718, %719 : vector<1x32xf32>
    %cst_218 = arith.constant 9.99999974E-6 : f32
    %721 = vector.broadcast %cst_218 : f32 to vector<1x32xf32>
    %722 = arith.addf %720, %721 : vector<1x32xf32>
    %723 = math.rsqrt %722 : vector<1x32xf32>
    %724 = arith.mulf %8, %723 : vector<1x32xf32>
    %cst_219 = arith.constant 5.000000e-01 : f32
    %725 = vector.broadcast %cst_219 : f32 to vector<8x32xf32>
    %726 = arith.mulf %725, %690 : vector<8x32xf32>
    %727 = math.tanh %726 : vector<8x32xf32>
    %cst_220 = arith.constant 5.000000e-01 : f32
    %728 = vector.broadcast %cst_220 : f32 to vector<8x32xf32>
    %729 = arith.mulf %728, %727 : vector<8x32xf32>
    %cst_221 = arith.constant 5.000000e-01 : f32
    %730 = vector.broadcast %cst_221 : f32 to vector<8x32xf32>
    %731 = arith.addf %729, %730 : vector<8x32xf32>
    %732 = vector.broadcast %724 : vector<1x32xf32> to vector<8x32xf32>
    %733 = arith.mulf %709, %732 : vector<8x32xf32>
    %734 = arith.mulf %713, %724 : vector<1x32xf32>
    %735 = arith.subf %9, %734 : vector<1x32xf32>
    %736 = vector.broadcast %735 : vector<1x32xf32> to vector<8x32xf32>
    %737 = arith.addf %733, %736 : vector<8x32xf32>
    %738 = math.tanh %737 : vector<8x32xf32>
    %739 = arith.mulf %731, %738 : vector<8x32xf32>
    %740 = arith.index_cast %c6_i32 : i32 to index
    %c0_222 = arith.constant 0 : index
    %c0_223 = arith.constant 0 : index
    %741 = vector.load %arg7[%740, %c0_222, %c0_223] : memref<8x8x64xf32, #tpu.memory_space<vmem>>, vector<1x8x32xf32>
    %742 = vector.shape_cast %741 : vector<1x8x32xf32> to vector<8x32xf32>
    %743 = vector.shape_cast %739 : vector<8x32xf32> to vector<1x8x32xf32>
    tpu.vector_store %arg7[%740, %c0_222, %c0_223], %743 {strides = array<i32>} : memref<8x8x64xf32, #tpu.memory_space<vmem>>, vector<1x8x32xf32>,
    %744 = arith.index_cast %c6_i32 : i32 to index
    %c0_224 = arith.constant 0 : index
    %c32_225 = arith.constant 32 : index
    %745 = vector.load %arg7[%744, %c0_224, %c32_225] : memref<8x8x64xf32, #tpu.memory_space<vmem>>, vector<1x8x32xf32>
    %746 = vector.shape_cast %745 : vector<1x8x32xf32> to vector<8x32xf32>
    %747 = vector.shape_cast %709 : vector<8x32xf32> to vector<1x8x32xf32>
    tpu.vector_store %arg7[%744, %c0_224, %c32_225], %747 {strides = array<i32>} : memref<8x8x64xf32, #tpu.memory_space<vmem>>, vector<1x8x32xf32>,
    %c7_i32 = arith.constant 7 : i32
    %748 = arith.index_cast %c7_i32 : i32 to index
    %c0_226 = arith.constant 0 : index
    %c0_227 = arith.constant 0 : index
    %749 = vector.load %arg1[%748, %c0_226, %c0_227] : memref<8x8x128xf32, #tpu.memory_space<vmem>>, vector<1x8x128xf32>
    %750 = vector.shape_cast %749 : vector<1x8x128xf32> to vector<8x128xf32>
    %cst_228 = arith.constant dense<0.000000e+00> : vector<8x128xf32>
    %751 = tpu.matmul %739, %10, %cst_228 {dimension_numbers = #tpu.dot_dimension_numbers<[1], [0], [0], [1], [0, 0, 1, 1], [], []>} : vector<8x32xf32>, vector<32x128xf32>, vector<8x128xf32> -> vector<8x128xf32>
    %cst_229 = arith.constant dense<0.000000e+00> : vector<128xf32>
    %752 = vector.multi_reduction <add>, %750, %cst_229 [0] : vector<8x128xf32> to vector<128xf32>
    %753 = vector.shape_cast %752 : vector<128xf32> to vector<1x128xf32>
    %cst_230 = arith.constant 1.250000e-01 : f32
    %754 = vector.broadcast %cst_230 : f32 to vector<1x128xf32>
    %755 = arith.mulf %753, %754 : vector<1x128xf32>
    %756 = vector.broadcast %755 : vector<1x128xf32> to vector<8x128xf32>
    %757 = arith.subf %750, %756 : vector<8x128xf32>
    %758 = arith.mulf %757, %757 : vector<8x128xf32>
    %cst_231 = arith.constant dense<0.000000e+00> : vector<128xf32>
    %759 = vector.multi_reduction <add>, %758, %cst_231 [0] : vector<8x128xf32> to vector<128xf32>
    %760 = vector.shape_cast %759 : vector<128xf32> to vector<1x128xf32>
    %cst_232 = arith.constant 1.250000e-01 : f32
    %761 = vector.broadcast %cst_232 : f32 to vector<1x128xf32>
    %762 = arith.mulf %760, %761 : vector<1x128xf32>
    %cst_233 = arith.constant 9.99999974E-6 : f32
    %763 = vector.broadcast %cst_233 : f32 to vector<1x128xf32>
    %764 = arith.addf %762, %763 : vector<1x128xf32>
    %765 = math.rsqrt %764 : vector<1x128xf32>
    %766 = arith.mulf %4, %765 : vector<1x128xf32>
    %cst_234 = arith.constant dense<0.000000e+00> : vector<128xf32>
    %767 = vector.multi_reduction <add>, %751, %cst_234 [0] : vector<8x128xf32> to vector<128xf32>
    %768 = vector.shape_cast %767 : vector<128xf32> to vector<1x128xf32>
    %cst_235 = arith.constant 1.250000e-01 : f32
    %769 = vector.broadcast %cst_235 : f32 to vector<1x128xf32>
    %770 = arith.mulf %768, %769 : vector<1x128xf32>
    %771 = vector.broadcast %770 : vector<1x128xf32> to vector<8x128xf32>
    %772 = arith.subf %751, %771 : vector<8x128xf32>
    %773 = arith.mulf %772, %772 : vector<8x128xf32>
    %cst_236 = arith.constant dense<0.000000e+00> : vector<128xf32>
    %774 = vector.multi_reduction <add>, %773, %cst_236 [0] : vector<8x128xf32> to vector<128xf32>
    %775 = vector.shape_cast %774 : vector<128xf32> to vector<1x128xf32>
    %cst_237 = arith.constant 1.250000e-01 : f32
    %776 = vector.broadcast %cst_237 : f32 to vector<1x128xf32>
    %777 = arith.mulf %775, %776 : vector<1x128xf32>
    %cst_238 = arith.constant 9.99999974E-6 : f32
    %778 = vector.broadcast %cst_238 : f32 to vector<1x128xf32>
    %779 = arith.addf %777, %778 : vector<1x128xf32>
    %780 = math.rsqrt %779 : vector<1x128xf32>
    %781 = arith.mulf %5, %780 : vector<1x128xf32>
    %782 = arith.mulf %755, %766 : vector<1x128xf32>
    %783 = arith.subf %6, %782 : vector<1x128xf32>
    %784 = arith.mulf %770, %781 : vector<1x128xf32>
    %785 = arith.subf %783, %784 : vector<1x128xf32>
    %786 = vector.broadcast %766 : vector<1x128xf32> to vector<8x128xf32>
    %787 = arith.mulf %750, %786 : vector<8x128xf32>
    %788 = vector.broadcast %781 : vector<1x128xf32> to vector<8x128xf32>
    %789 = arith.mulf %751, %788 : vector<8x128xf32>
    %790 = arith.addf %787, %789 : vector<8x128xf32>
    %791 = vector.broadcast %785 : vector<1x128xf32> to vector<8x128xf32>
    %792 = arith.addf %790, %791 : vector<8x128xf32>
    %793 = vector.extract_strided_slice %792 {offsets = [0, 0], sizes = [8, 32], strides = [1, 1]} : vector<8x128xf32> to vector<8x32xf32>
    %794 = vector.extract_strided_slice %792 {offsets = [0, 32], sizes = [8, 32], strides = [1, 1]} : vector<8x128xf32> to vector<8x32xf32>
    %795 = vector.extract_strided_slice %792 {offsets = [0, 64], sizes = [8, 32], strides = [1, 1]} : vector<8x128xf32> to vector<8x32xf32>
    %796 = vector.extract_strided_slice %792 {offsets = [0, 96], sizes = [8, 32], strides = [1, 1]} : vector<8x128xf32> to vector<8x32xf32>
    %cst_239 = arith.constant 5.000000e-01 : f32
    %797 = vector.broadcast %cst_239 : f32 to vector<8x32xf32>
    %798 = arith.mulf %797, %793 : vector<8x32xf32>
    %799 = math.tanh %798 : vector<8x32xf32>
    %cst_240 = arith.constant 5.000000e-01 : f32
    %800 = vector.broadcast %cst_240 : f32 to vector<8x32xf32>
    %801 = arith.mulf %800, %799 : vector<8x32xf32>
    %cst_241 = arith.constant 5.000000e-01 : f32
    %802 = vector.broadcast %cst_241 : f32 to vector<8x32xf32>
    %803 = arith.addf %801, %802 : vector<8x32xf32>
    %804 = arith.mulf %803, %709 : vector<8x32xf32>
    %cst_242 = arith.constant 5.000000e-01 : f32
    %805 = vector.broadcast %cst_242 : f32 to vector<8x32xf32>
    %806 = arith.mulf %805, %794 : vector<8x32xf32>
    %807 = math.tanh %806 : vector<8x32xf32>
    %cst_243 = arith.constant 5.000000e-01 : f32
    %808 = vector.broadcast %cst_243 : f32 to vector<8x32xf32>
    %809 = arith.mulf %808, %807 : vector<8x32xf32>
    %cst_244 = arith.constant 5.000000e-01 : f32
    %810 = vector.broadcast %cst_244 : f32 to vector<8x32xf32>
    %811 = arith.addf %809, %810 : vector<8x32xf32>
    %812 = math.tanh %796 : vector<8x32xf32>
    %813 = arith.mulf %811, %812 : vector<8x32xf32>
    %814 = arith.addf %804, %813 : vector<8x32xf32>
    %cst_245 = arith.constant dense<0.000000e+00> : vector<32xf32>
    %815 = vector.multi_reduction <add>, %814, %cst_245 [0] : vector<8x32xf32> to vector<32xf32>
    %816 = vector.shape_cast %815 : vector<32xf32> to vector<1x32xf32>
    %cst_246 = arith.constant 1.250000e-01 : f32
    %817 = vector.broadcast %cst_246 : f32 to vector<1x32xf32>
    %818 = arith.mulf %816, %817 : vector<1x32xf32>
    %819 = vector.broadcast %818 : vector<1x32xf32> to vector<8x32xf32>
    %820 = arith.subf %814, %819 : vector<8x32xf32>
    %821 = arith.mulf %820, %820 : vector<8x32xf32>
    %cst_247 = arith.constant dense<0.000000e+00> : vector<32xf32>
    %822 = vector.multi_reduction <add>, %821, %cst_247 [0] : vector<8x32xf32> to vector<32xf32>
    %823 = vector.shape_cast %822 : vector<32xf32> to vector<1x32xf32>
    %cst_248 = arith.constant 1.250000e-01 : f32
    %824 = vector.broadcast %cst_248 : f32 to vector<1x32xf32>
    %825 = arith.mulf %823, %824 : vector<1x32xf32>
    %cst_249 = arith.constant 9.99999974E-6 : f32
    %826 = vector.broadcast %cst_249 : f32 to vector<1x32xf32>
    %827 = arith.addf %825, %826 : vector<1x32xf32>
    %828 = math.rsqrt %827 : vector<1x32xf32>
    %829 = arith.mulf %8, %828 : vector<1x32xf32>
    %cst_250 = arith.constant 5.000000e-01 : f32
    %830 = vector.broadcast %cst_250 : f32 to vector<8x32xf32>
    %831 = arith.mulf %830, %795 : vector<8x32xf32>
    %832 = math.tanh %831 : vector<8x32xf32>
    %cst_251 = arith.constant 5.000000e-01 : f32
    %833 = vector.broadcast %cst_251 : f32 to vector<8x32xf32>
    %834 = arith.mulf %833, %832 : vector<8x32xf32>
    %cst_252 = arith.constant 5.000000e-01 : f32
    %835 = vector.broadcast %cst_252 : f32 to vector<8x32xf32>
    %836 = arith.addf %834, %835 : vector<8x32xf32>
    %837 = vector.broadcast %829 : vector<1x32xf32> to vector<8x32xf32>
    %838 = arith.mulf %814, %837 : vector<8x32xf32>
    %839 = arith.mulf %818, %829 : vector<1x32xf32>
    %840 = arith.subf %9, %839 : vector<1x32xf32>
    %841 = vector.broadcast %840 : vector<1x32xf32> to vector<8x32xf32>
    %842 = arith.addf %838, %841 : vector<8x32xf32>
    %843 = math.tanh %842 : vector<8x32xf32>
    %844 = arith.mulf %836, %843 : vector<8x32xf32>
    %845 = arith.index_cast %c7_i32 : i32 to index
    %c0_253 = arith.constant 0 : index
    %c0_254 = arith.constant 0 : index
    %846 = vector.load %arg7[%845, %c0_253, %c0_254] : memref<8x8x64xf32, #tpu.memory_space<vmem>>, vector<1x8x32xf32>
    %847 = vector.shape_cast %846 : vector<1x8x32xf32> to vector<8x32xf32>
    %848 = vector.shape_cast %844 : vector<8x32xf32> to vector<1x8x32xf32>
    tpu.vector_store %arg7[%845, %c0_253, %c0_254], %848 {strides = array<i32>} : memref<8x8x64xf32, #tpu.memory_space<vmem>>, vector<1x8x32xf32>,
    %849 = arith.index_cast %c7_i32 : i32 to index
    %c0_255 = arith.constant 0 : index
    %c32_256 = arith.constant 32 : index
    %850 = vector.load %arg7[%849, %c0_255, %c32_256] : memref<8x8x64xf32, #tpu.memory_space<vmem>>, vector<1x8x32xf32>
    %851 = vector.shape_cast %850 : vector<1x8x32xf32> to vector<8x32xf32>
    %852 = vector.shape_cast %814 : vector<8x32xf32> to vector<1x8x32xf32>
    tpu.vector_store %arg7[%849, %c0_255, %c32_256], %852 {strides = array<i32>} : memref<8x8x64xf32, #tpu.memory_space<vmem>>, vector<1x8x32xf32>,
    %c8_i32 = arith.constant 8 : i32
    %c0_257 = arith.constant 0 : index
    %c0_258 = arith.constant 0 : index
    %853 = vector.load %arg8[%c0_257, %c0_258] : memref<8x32xf32, #tpu.memory_space<vmem>>, vector<8x32xf32>
    tpu.vector_store %arg8[%c0_257, %c0_258], %844 {strides = array<i32>} : memref<8x32xf32, #tpu.memory_space<vmem>>, vector<8x32xf32>,
    %c0_259 = arith.constant 0 : index
    %c0_260 = arith.constant 0 : index
    %854 = vector.load %arg9[%c0_259, %c0_260] : memref<8x32xf32, #tpu.memory_space<vmem>>, vector<8x32xf32>
    tpu.vector_store %arg9[%c0_259, %c0_260], %814 {strides = array<i32>} : memref<8x32xf32, #tpu.memory_space<vmem>>, vector<8x32xf32>,
    return
  }
  func.func @transform_0(%arg0: i32) -> (i32, i32, i32) {
    %c0_i32 = arith.constant 0 : i32
    %c0_i32_0 = arith.constant 0 : i32
    %c0_i32_1 = arith.constant 0 : i32
    return %arg0, %c0_i32, %c0_i32_0 : i32, i32, i32
  }
  func.func @transform_1(%arg0: i32) -> (i32, i32) {
    %c0_i32 = arith.constant 0 : i32
    %c0_i32_0 = arith.constant 0 : i32
    %c0_i32_1 = arith.constant 0 : i32
    return %c0_i32, %c0_i32_0 : i32, i32
  }
  func.func @transform_2(%arg0: i32) -> (i32, i32) {
    %c0_i32 = arith.constant 0 : i32
    %c0_i32_0 = arith.constant 0 : i32
    %c0_i32_1 = arith.constant 0 : i32
    return %c0_i32, %c0_i32_0 : i32, i32
  }
  func.func @transform_3(%arg0: i32) -> (i32, i32) {
    %c0_i32 = arith.constant 0 : i32
    %c0_i32_0 = arith.constant 0 : i32
    %c0_i32_1 = arith.constant 0 : i32
    return %c0_i32, %c0_i32_0 : i32, i32
  }
  func.func @transform_4(%arg0: i32) -> (i32, i32) {
    %c0_i32 = arith.constant 0 : i32
    %c0_i32_0 = arith.constant 0 : i32
    %c0_i32_1 = arith.constant 0 : i32
    return %c0_i32, %c0_i32_0 : i32, i32
  }
  func.func @transform_5(%arg0: i32) -> (i32, i32) {
    %c0_i32 = arith.constant 0 : i32
    %c0_i32_0 = arith.constant 0 : i32
    %c0_i32_1 = arith.constant 0 : i32
    return %c0_i32, %c0_i32_0 : i32, i32
  }
  func.func @transform_6(%arg0: i32) -> (i32, i32, i32) {
    %c0_i32 = arith.constant 0 : i32
    %c0_i32_0 = arith.constant 0 : i32
    %c0_i32_1 = arith.constant 0 : i32
    return %arg0, %c0_i32, %c0_i32_0 : i32, i32, i32
  }
}

</mosaic_0001>

<llo_original>
// kernel: bnlstm_sequence.1
$region0: #{bnlstm_sequence.1}
  #allocation0 [shape = 'u32[]', space=smem, size = 0x4, offset = 0x4, fixed_abs, tag = 'smem constant byte address 0x4 - core index']
  #allocation1 [shape = 'u32[144,128]{1,0:T(1,128)}', space=vmem, size = 0x12000, scoped, tag = 'internal scratch']
  #allocation2 [shape = 'f32[8,32]{1,0:T(8,128)}', space=vmem, size = 0x1000, scoped, tag = 'scratch operand']
  #allocation3 [shape = 'f32[8,32]{1,0:T(8,128)}', space=vmem, size = 0x1000, scoped, tag = 'scratch operand']
  %s0 = inlined_call_operand.vmem [shape: f32[8,8,128], index: 0, kind: input, shape index: {}]
  %s1 = inlined_call_operand.vmem [shape: f32[8,32], index: 1, kind: input, shape index: {}]
  %s2 = inlined_call_operand.vmem [shape: f32[8,32], index: 2, kind: input, shape index: {}]
  %s3 = inlined_call_operand.vmem [shape: f32[32,128], index: 3, kind: input, shape index: {}]
  %s4 = inlined_call_operand.vmem [shape: f32[3,128], index: 4, kind: input, shape index: {}]
  %s5 = inlined_call_operand.vmem [shape: f32[2,32], index: 5, kind: input, shape index: {}]
  %s6 = inlined_call_operand.vmem [shape: f32[8,8,64], index: 6, kind: output, shape index: {}]
  %s7 = sld [smem:[#allocation0]]
  $region38: #{bnlstm_sequence.1} parent=0
    _
  %s9 = ssub.s32 1, %s7
  %s10 = scalar_select 0, %s9, %s7
  // Predicated region
  $region2: #{bnlstm_sequence.1} parent=0 // pred_check
    _
  $region3: #{bnlstm_sequence.1} parent=0 // pred_check_branch
    %12 = sbr.rel (0) target = $region5
  $region4: #{bnlstm_sequence.1} parent=0 // pred_region
    _
  $region5: #{bnlstm_sequence.1} parent=0 // pred_fallthru
    _
  // Predicated region
  $region6: #{bnlstm_sequence.1} parent=0 // pred_check
    _
  $region7: #{bnlstm_sequence.1} parent=0 // pred_check_branch
    %14 = sbr.rel (0) target = $region9
  $region8: #{bnlstm_sequence.1} parent=0 // pred_region
    _
  $region9: #{bnlstm_sequence.1} parent=0 // pred_fallthru
    _
  // Predicated region
  $region10: #{bnlstm_sequence.1} parent=0 // pred_check
    _
  $region11: #{bnlstm_sequence.1} parent=0 // pred_check_branch
    %16 = sbr.rel (0) target = $region13
  $region12: #{bnlstm_sequence.1} parent=0 // pred_region
    _
  $region13: #{bnlstm_sequence.1} parent=0 // pred_fallthru
    _
  // Predicated region
  $region14: #{bnlstm_sequence.1} parent=0 // pred_check
    _
  $region15: #{bnlstm_sequence.1} parent=0 // pred_check_branch
    %18 = sbr.rel (0) target = $region17
  $region16: #{bnlstm_sequence.1} parent=0 // pred_region
    _
  $region17: #{bnlstm_sequence.1} parent=0 // pred_fallthru
    _
  // Predicated region
  $region18: #{bnlstm_sequence.1} parent=0 // pred_check
    _
  $region19: #{bnlstm_sequence.1} parent=0 // pred_check_branch
    %20 = sbr.rel (0) target = $region21
  $region20: #{bnlstm_sequence.1} parent=0 // pred_region
    _
  $region21: #{bnlstm_sequence.1} parent=0 // pred_fallthru
    _
  // Predicated region
  $region22: #{bnlstm_sequence.1} parent=0 // pred_check
    _
  $region23: #{bnlstm_sequence.1} parent=0 // pred_check_branch
    %22 = sbr.rel (0) target = $region25
  $region24: #{bnlstm_sequence.1} parent=0 // pred_region
    _
  $region25: #{bnlstm_sequence.1} parent=0 // pred_fallthru
    _
  %p23 = scmp.eq.s32.totalorder 0, 0
  // Predicated region
  $region26: #{bnlstm_sequence.1} parent=0 // pred_check
    %p24 = pneg %p23
  $region27: #{bnlstm_sequence.1} parent=0 // pred_check_branch
    %26 = sbr.rel (%p24) target = $region29
  $region28: #{bnlstm_sequence.1} parent=0 // pred_region
    %v27 = vld [vmem:[%s1] sm:$0xff]
    %vm28 = vcmask 261120
    %29 = vst.msk [vmem:[#allocation2] sm:$0xff] %vm28, %v27
    %v30 = vld [vmem:[%s2] sm:$0xff]
    %31 = vst.msk [vmem:[#allocation3] sm:$0xff] %vm28, %v30
  $region29: #{bnlstm_sequence.1} parent=0 // pred_fallthru
    _
  %v32 = vld [vmem:[%s4] sm:$0x7]
  %v33 = vld [vmem:[%s5] sm:$0x3]
  %v34 = vld [vmem:[%s3] sm:$0xff]
  %v35 = vld [vmem:[%s3 + $0x8] sm:$0xff]
  %v36 = vld [vmem:[%s3 + $0x10] sm:$0xff]
  %v37 = vld [vmem:[%s3 + $0x18] sm:$0xff]
  %v38 = vld [vmem:[#allocation2] sm:$0xff]
  %v39 = vld [vmem:[#allocation3] sm:$0xff]
  %v40 = vld [vmem:[%s0] sm:$0xff]
  %vm41 = vcmask 261120
  %v43 = vsel %vm41, %v38, 0
  %45 = vmatprep.subr.mxu0 0.0
  %46 = vmatpush1.msra.mxu0 %v34
  %47 = vmatprep.subr.mxu0 0.0
  %48 = vmatpush1.msra.mxu0 %v35
  %49 = vmatprep.subr.mxu0 0.0
  %50 = vmatpush1.msra.mxu0 %v36
  %51 = vmatprep.subr.mxu0 0.0
  %52 = vmatpush1.msra.mxu0 %v37
  %53 = vmatprep.subr.mxu0 0.0
  %54 = vmatpush1.msra.mxu0 0.0
  %55 = vmatprep.subr.mxu0 0.0
  %56 = vmatpush1.msra.mxu0 0.0
  %57 = vmatprep.subr.mxu0 0.0
  %58 = vmatpush1.msra.mxu0 0.0
  %59 = vmatprep.subr.mxu0 0.0
  %60 = vmatpush1.msra.mxu0 0.0
  %61 = vmatprep.subr.mxu0 0.0
  %62 = vmatpush1.msra.mxu0 0.0
  %63 = vmatprep.subr.mxu0 0.0
  %64 = vmatpush1.msra.mxu0 0.0
  %65 = vmatprep.subr.mxu0 0.0
  %66 = vmatpush1.msra.mxu0 0.0
  %67 = vmatprep.subr.mxu0 0.0
  %68 = vmatpush1.msra.mxu0 0.0
  %69 = vmatprep.subr.mxu0 0.0
  %70 = vmatpush1.msra.mxu0 0.0
  %71 = vmatprep.subr.mxu0 0.0
  %72 = vmatpush1.msra.mxu0 0.0
  %73 = vmatprep.subr.mxu0 0.0
  %74 = vmatpush1.msra.mxu0 0.0
  %75 = vmatprep.subr.mxu0 0.0
  %76 = vmatpush1.msra.mxu0 0.0
  %77 = vmatprep.subr.mxu0 0.0
  %78 = vmatpush1.msra.mxu0 0.0
  %79 = vmatprep.subr.mxu0 0.0
  %80 = vmatpush1.msra.mxu0 0.0
  %81 = vmatprep.subr.mxu0 0.0
  %82 = vmatpush1.msra.mxu0 0.0
  %83 = vmatprep.subr.mxu0 0.0
  %84 = vmatpush1.msra.mxu0 0.0
  %85 = vmatprep.subr.mxu0 0.0
  %86 = vmatpush1.msra.mxu0 0.0
  %87 = vmatprep.subr.mxu0 0.0
  %88 = vmatpush1.msra.mxu0 0.0
  %89 = vmatprep.subr.mxu0 0.0
  %90 = vmatpush1.msra.mxu0 0.0
  %91 = vmatprep.subr.mxu0 0.0
  %92 = vmatpush1.msra.mxu0 0.0
  %93 = vmatprep.subr.mxu0 0.0
  %94 = vmatpush1.msra.mxu0 0.0
  %95 = vmatprep.subr.mxu0 0.0
  %96 = vmatpush1.msra.mxu0 0.0
  %97 = vmatprep.subr.mxu0 0.0
  %98 = vmatpush1.msra.mxu0 0.0
  %99 = vmatprep.subr.mxu0 0.0
  %100 = vmatpush1.msra.mxu0 0.0
  %101 = vmatprep.subr.mxu0 0.0
  %102 = vmatpush1.msra.mxu0 0.0
  %103 = vmatprep.subr.mxu0 0.0
  %104 = vmatpush1.msra.mxu0 0.0
  %105 = vmatprep.subr.mxu0 0.0
  %106 = vmatpush1.msra.mxu0 0.0
  %107 = vmatprep.subr.mxu0 0.0
  %108 = vmatpush1.msra.mxu0 0.0
  %109 = vmatprep.mubr.f32.mxu0 0.0
  %110 = vmatmul.mubr.f32.gmra.mrb[0].mxu0 %v43
  %v111 = vpop.f32.mrb[0].mxu0
  %v112 = vadd.f32 0.0, %v111
  %v113 = vpop.f32.mrb[0].mxu0
  %114 = vdwg.mxu0
  %v115 = vrot.slane %v40, 4
  %v116 = vadd.f32 %v40, %v115
  %v117 = vrot.slane %v116, 2
  %v118 = vadd.f32 %v116, %v117
  %v119 = vrot.slane %v118, 1
  %v120 = vadd.f32 %v118, %v119
  %v121 = vmul.f32 %v120, 0.125
  %v122 = vsub.f32 %v40, %v121
  %v123 = vmul.f32 %v122, %v122
  %v124 = vrot.slane %v123, 4
  %v125 = vadd.f32 %v123, %v124
  %v126 = vrot.slane %v125, 2
  %v127 = vadd.f32 %v125, %v126
  %v128 = vrot.slane %v127, 1
  %v129 = vadd.f32 %v127, %v128
  %v130 = vmul.f32 %v129, 0.125
  %v131 = vadd.f32 %v130, 1e-05
  %v132 = vrsqrt.pop %v131
  %v133 = vmul.f32 %v32, %v132
  %v134 = vrot.slane %v112, 4
  %v135 = vadd.f32 %v112, %v134
  %v136 = vrot.slane %v135, 2
  %v137 = vadd.f32 %v135, %v136
  %v138 = vrot.slane %v137, 1
  %v139 = vadd.f32 %v137, %v138
  %v140 = vmul.f32 %v139, 0.125
  %v141 = vsub.f32 %v112, %v140
  %v142 = vmul.f32 %v141, %v141
  %v143 = vrot.slane %v142, 4
  %v144 = vadd.f32 %v142, %v143
  %v145 = vrot.slane %v144, 2
  %v146 = vadd.f32 %v144, %v145
  %v147 = vrot.slane %v146, 1
  %v148 = vadd.f32 %v146, %v147
  %v149 = vmul.f32 %v148, 0.125
  %v150 = vadd.f32 %v149, 1e-05
  %v151 = vrsqrt.pop %v150
  %v152 = vmul.f32 %v32, %v151
  %v153 = vmul.f32 %v121, %v133
  %v155 = vrot.slane %v153, 6
  %v157 = vsub.f32 %v32, %v155
  %v158 = vmul.f32 %v140, %v152
  %v160 = vrot.slane %v158, 7
  %v162 = vsub.f32 %v157, %v160
  %v163 = vlaneseq
  %v164 = vshrl.u32 %v163, 7
  %v165 = vsub.s32 0, %v164
  %v166 = vrot.slane %v133, %v165
  %v167 = vmul.f32 %v40, %v166
  %v168 = vlaneseq
  %v169 = vshrl.u32 %v168, 7
  %v170 = vsub.s32 1, %v169
  %v171 = vrot.slane %v152, %v170
  %v172 = vmul.f32 %v112, %v171
  %v173 = vadd.f32 %v167, %v172
  %v174 = vlaneseq
  %v175 = vshrl.u32 %v174, 7
  %v176 = vsub.s32 2, %v175
  %v177 = vrot.slane %v162, %v176
  %v178 = vadd.f32 %v173, %v177
  %v179 = vmul.f32 %v178, 0.5
  %v180 = vtanh.pop %v179
  %v181 = vmul.f32 %v180, 0.5
  %v182 = vadd.f32 %v181, 0.5
  %v183 = vmul.f32 %v182, %v39
  %v184 = vtanh.pop %v178
  %186 = vrot.lane.b32.xlu0 %v184, 64
  %v187 = vpop.permute.xlu0 %186
  %v189 = vmul.f32 %v182, %v187
  %191 = vrot.lane.b32.xlu0 %v189, 96
  %v192 = vpop.permute.xlu0 %191
  %v194 = vadd.f32 %v183, %v192
  %v195 = vsel %vm41, %v194, 0.0
  %v196 = vrot.slane %v195, 4
  %v197 = vadd.f32 %v195, %v196
  %v198 = vrot.slane %v197, 2
  %v199 = vadd.f32 %v197, %v198
  %v200 = vrot.slane %v199, 1
  %v201 = vadd.f32 %v199, %v200
  %v202 = vmul.f32 %v201, 0.125
  %v203 = vsub.f32 %v194, %v202
  %v204 = vmul.f32 %v203, %v203
  %v205 = vsel %vm41, %v204, 0.0
  %v206 = vrot.slane %v205, 4
  %v207 = vadd.f32 %v205, %v206
  %v208 = vrot.slane %v207, 2
  %v209 = vadd.f32 %v207, %v208
  %v210 = vrot.slane %v209, 1
  %v211 = vadd.f32 %v209, %v210
  %v212 = vmul.f32 %v211, 0.125
  %v213 = vadd.f32 %v212, 1e-05
  %v214 = vrsqrt.pop %v213
  %v215 = vmul.f32 %v33, %v214
  %v216 = vlaneseq
  %v217 = vshrl.u32 %v216, 7
  %v218 = vsub.s32 0, %v217
  %v219 = vrot.slane %v215, %v218
  %v220 = vmul.f32 %v194, %v219
  %v221 = vmul.f32 %v202, %v215
  %v223 = vrot.slane %v221, 7
  %v225 = vsub.f32 %v33, %v223
  %v226 = vlaneseq
  %v227 = vshrl.u32 %v226, 7
  %v228 = vsub.s32 1, %v227
  %v229 = vrot.slane %v225, %v228
  %v230 = vadd.f32 %v220, %v229
  %v231 = vtanh.pop %v230
  %233 = vrot.lane.b32.xlu0 %v231, 64
  %v234 = vpop.permute.xlu0 %233
  %v236 = vmul.f32 %v182, %v234
  %238 = vrot.lane.b32.xlu0 %v236, 64
  %v239 = vpop.permute.xlu0 %238
  %241 = vst.msk [vmem:[%s6] sm:$0xff] %vm41, %v239
  %243 = vrot.lane.b32.xlu0 %v194, 32
  %v244 = vpop.permute.xlu0 %243
  %vm246 = vcmask 523520
  %247 = vst.msk [vmem:[%s6] sm:$0xff] %vm246, %v244
  %s248 = scalar_lea.vmem %s0, 8
  %v249 = vld [vmem:[%s248] sm:$0xff]
  %v250 = vsel %vm41, %v239, 0
  %252 = vmatprep.subr.mxu0 0.0
  %253 = vmatpush1.msra.mxu0 %v34
  %254 = vmatprep.subr.mxu0 0.0
  %255 = vmatpush1.msra.mxu0 %v35
  %256 = vmatprep.subr.mxu0 0.0
  %257 = vmatpush1.msra.mxu0 %v36
  %258 = vmatprep.subr.mxu0 0.0
  %259 = vmatpush1.msra.mxu0 %v37
  %260 = vmatprep.subr.mxu0 0.0
  %261 = vmatpush1.msra.mxu0 0.0
  %262 = vmatprep.subr.mxu0 0.0
  %263 = vmatpush1.msra.mxu0 0.0
  %264 = vmatprep.subr.mxu0 0.0
  %265 = vmatpush1.msra.mxu0 0.0
  %266 = vmatprep.subr.mxu0 0.0
  %267 = vmatpush1.msra.mxu0 0.0
  %268 = vmatprep.subr.mxu0 0.0
  %269 = vmatpush1.msra.mxu0 0.0
  %270 = vmatprep.subr.mxu0 0.0
  %271 = vmatpush1.msra.mxu0 0.0
  %272 = vmatprep.subr.mxu0 0.0
  %273 = vmatpush1.msra.mxu0 0.0
  %274 = vmatprep.subr.mxu0 0.0
  %275 = vmatpush1.msra.mxu0 0.0
  %276 = vmatprep.subr.mxu0 0.0
  %277 = vmatpush1.msra.mxu0 0.0
  %278 = vmatprep.subr.mxu0 0.0
  %279 = vmatpush1.msra.mxu0 0.0
  %280 = vmatprep.subr.mxu0 0.0
  %281 = vmatpush1.msra.mxu0 0.0
  %282 = vmatprep.subr.mxu0 0.0
  %283 = vmatpush1.msra.mxu0 0.0
  %284 = vmatprep.subr.mxu0 0.0
  %285 = vmatpush1.msra.mxu0 0.0
  %286 = vmatprep.subr.mxu0 0.0
  %287 = vmatpush1.msra.mxu0 0.0
  %288 = vmatprep.subr.mxu0 0.0
  %289 = vmatpush1.msra.mxu0 0.0
  %290 = vmatprep.subr.mxu0 0.0
  %291 = vmatpush1.msra.mxu0 0.0
  %292 = vmatprep.subr.mxu0 0.0
  %293 = vmatpush1.msra.mxu0 0.0
  %294 = vmatprep.subr.mxu0 0.0
  %295 = vmatpush1.msra.mxu0 0.0
  %296 = vmatprep.subr.mxu0 0.0
  %297 = vmatpush1.msra.mxu0 0.0
  %298 = vmatprep.subr.mxu0 0.0
  %299 = vmatpush1.msra.mxu0 0.0
  %300 = vmatprep.subr.mxu0 0.0
  %301 = vmatpush1.msra.mxu0 0.0
  %302 = vmatprep.subr.mxu0 0.0
  %303 = vmatpush1.msra.mxu0 0.0
  %304 = vmatprep.subr.mxu0 0.0
  %305 = vmatpush1.msra.mxu0 0.0
  %306 = vmatprep.subr.mxu0 0.0
  %307 = vmatpush1.msra.mxu0 0.0
  %308 = vmatprep.subr.mxu0 0.0
  %309 = vmatpush1.msra.mxu0 0.0
  %310 = vmatprep.subr.mxu0 0.0
  %311 = vmatpush1.msra.mxu0 0.0
  %312 = vmatprep.subr.mxu0 0.0
  %313 = vmatpush1.msra.mxu0 0.0
  %314 = vmatprep.subr.mxu0 0.0
  %315 = vmatpush1.msra.mxu0 0.0
  %316 = vmatprep.mubr.f32.mxu0 0.0
  %317 = vmatmul.mubr.f32.gmra.mrb[0].mxu0 %v250
  %v318 = vpop.f32.mrb[0].mxu0
  %v319 = vadd.f32 0.0, %v318
  %v320 = vpop.f32.mrb[0].mxu0
  %321 = vdwg.mxu0
  %v322 = vrot.slane %v249, 4
  %v323 = vadd.f32 %v249, %v322
  %v324 = vrot.slane %v323, 2
  %v325 = vadd.f32 %v323, %v324
  %v326 = vrot.slane %v325, 1
  %v327 = vadd.f32 %v325, %v326
  %v328 = vmul.f32 %v327, 0.125
  %v329 = vsub.f32 %v249, %v328
  %v330 = vmul.f32 %v329, %v329
  %v331 = vrot.slane %v330, 4
  %v332 = vadd.f32 %v330, %v331
  %v333 = vrot.slane %v332, 2
  %v334 = vadd.f32 %v332, %v333
  %v335 = vrot.slane %v334, 1
  %v336 = vadd.f32 %v334, %v335
  %v337 = vmul.f32 %v336, 0.125
  %v338 = vadd.f32 %v337, 1e-05
  %v339 = vrsqrt.pop %v338
  %v340 = vmul.f32 %v32, %v339
  %v341 = vrot.slane %v319, 4
  %v342 = vadd.f32 %v319, %v341
  %v343 = vrot.slane %v342, 2
  %v344 = vadd.f32 %v342, %v343
  %v345 = vrot.slane %v344, 1
  %v346 = vadd.f32 %v344, %v345
  %v347 = vmul.f32 %v346, 0.125
  %v348 = vsub.f32 %v319, %v347
  %v349 = vmul.f32 %v348, %v348
  %v350 = vrot.slane %v349, 4
  %v351 = vadd.f32 %v349, %v350
  %v352 = vrot.slane %v351, 2
  %v353 = vadd.f32 %v351, %v352
  %v354 = vrot.slane %v353, 1
  %v355 = vadd.f32 %v353, %v354
  %v356 = vmul.f32 %v355, 0.125
  %v357 = vadd.f32 %v356, 1e-05
  %v358 = vrsqrt.pop %v357
  %v359 = vmul.f32 %v32, %v358
  %v360 = vmul.f32 %v328, %v340
  %v362 = vrot.slane %v360, 6
  %v364 = vsub.f32 %v32, %v362
  %v365 = vmul.f32 %v347, %v359
  %v367 = vrot.slane %v365, 7
  %v369 = vsub.f32 %v364, %v367
  %v370 = vlaneseq
  %v371 = vshrl.u32 %v370, 7
  %v372 = vsub.s32 0, %v371
  %v373 = vrot.slane %v340, %v372
  %v374 = vmul.f32 %v249, %v373
  %v375 = vlaneseq
  %v376 = vshrl.u32 %v375, 7
  %v377 = vsub.s32 1, %v376
  %v378 = vrot.slane %v359, %v377
  %v379 = vmul.f32 %v319, %v378
  %v380 = vadd.f32 %v374, %v379
  %v381 = vlaneseq
  %v382 = vshrl.u32 %v381, 7
  %v383 = vsub.s32 2, %v382
  %v384 = vrot.slane %v369, %v383
  %v385 = vadd.f32 %v380, %v384
  %v386 = vmul.f32 %v385, 0.5
  %v387 = vtanh.pop %v386
  %v388 = vmul.f32 %v387, 0.5
  %v389 = vadd.f32 %v388, 0.5
  %v390 = vmul.f32 %v389, %v194
  %v391 = vtanh.pop %v385
  %393 = vrot.lane.b32.xlu0 %v391, 64
  %v394 = vpop.permute.xlu0 %393
  %v396 = vmul.f32 %v389, %v394
  %398 = vrot.lane.b32.xlu0 %v396, 96
  %v399 = vpop.permute.xlu0 %398
  %v401 = vadd.f32 %v390, %v399
  %v402 = vsel %vm41, %v401, 0.0
  %v403 = vrot.slane %v402, 4
  %v404 = vadd.f32 %v402, %v403
  %v405 = vrot.slane %v404, 2
  %v406 = vadd.f32 %v404, %v405
  %v407 = vrot.slane %v406, 1
  %v408 = vadd.f32 %v406, %v407
  %v409 = vmul.f32 %v408, 0.125
  %v410 = vsub.f32 %v401, %v409
  %v411 = vmul.f32 %v410, %v410
  %v412 = vsel %vm41, %v411, 0.0
  %v413 = vrot.slane %v412, 4
  %v414 = vadd.f32 %v412, %v413
  %v415 = vrot.slane %v414, 2
  %v416 = vadd.f32 %v414, %v415
  %v417 = vrot.slane %v416, 1
  %v418 = vadd.f32 %v416, %v417
  %v419 = vmul.f32 %v418, 0.125
  %v420 = vadd.f32 %v419, 1e-05
  %v421 = vrsqrt.pop %v420
  %v422 = vmul.f32 %v33, %v421
  %v423 = vlaneseq
  %v424 = vshrl.u32 %v423, 7
  %v425 = vsub.s32 0, %v424
  %v426 = vrot.slane %v422, %v425
  %v427 = vmul.f32 %v401, %v426
  %v428 = vmul.f32 %v409, %v422
  %v430 = vrot.slane %v428, 7
  %v432 = vsub.f32 %v33, %v430
  %v433 = vlaneseq
  %v434 = vshrl.u32 %v433, 7
  %v435 = vsub.s32 1, %v434
  %v436 = vrot.slane %v432, %v435
  %v437 = vadd.f32 %v427, %v436
  %v438 = vtanh.pop %v437
  %440 = vrot.lane.b32.xlu0 %v438, 64
  %v441 = vpop.permute.xlu0 %440
  %v443 = vmul.f32 %v389, %v441
  %445 = vrot.lane.b32.xlu0 %v443, 64
  %v446 = vpop.permute.xlu0 %445
  %s448 = scalar_lea.vmem %s6, 8
  %449 = vst.msk [vmem:[%s448] sm:$0xff] %vm41, %v446
  %451 = vrot.lane.b32.xlu0 %v401, 32
  %v452 = vpop.permute.xlu0 %451
  %454 = vst.msk [vmem:[%s448] sm:$0xff] %vm246, %v452
  %s455 = scalar_lea.vmem %s0, 16
  %v456 = vld [vmem:[%s455] sm:$0xff]
  %v457 = vsel %vm41, %v446, 0
  %459 = vmatprep.subr.mxu0 0.0
  %460 = vmatpush1.msra.mxu0 %v34
  %461 = vmatprep.subr.mxu0 0.0
  %462 = vmatpush1.msra.mxu0 %v35
  %463 = vmatprep.subr.mxu0 0.0
  %464 = vmatpush1.msra.mxu0 %v36
  %465 = vmatprep.subr.mxu0 0.0
  %466 = vmatpush1.msra.mxu0 %v37
  %467 = vmatprep.subr.mxu0 0.0
  %468 = vmatpush1.msra.mxu0 0.0
  %469 = vmatprep.subr.mxu0 0.0
  %470 = vmatpush1.msra.mxu0 0.0
  %471 = vmatprep.subr.mxu0 0.0
  %472 = vmatpush1.msra.mxu0 0.0
  %473 = vmatprep.subr.mxu0 0.0
  %474 = vmatpush1.msra.mxu0 0.0
  %475 = vmatprep.subr.mxu0 0.0
  %476 = vmatpush1.msra.mxu0 0.0
  %477 = vmatprep.subr.mxu0 0.0
  %478 = vmatpush1.msra.mxu0 0.0
  %479 = vmatprep.subr.mxu0 0.0
  %480 = vmatpush1.msra.mxu0 0.0
  %481 = vmatprep.subr.mxu0 0.0
  %482 = vmatpush1.msra.mxu0 0.0
  %483 = vmatprep.subr.mxu0 0.0
  %484 = vmatpush1.msra.mxu0 0.0
  %485 = vmatprep.subr.mxu0 0.0
  %486 = vmatpush1.msra.mxu0 0.0
  %487 = vmatprep.subr.mxu0 0.0
  %488 = vmatpush1.msra.mxu0 0.0
  %489 = vmatprep.subr.mxu0 0.0
  %490 = vmatpush1.msra.mxu0 0.0
  %491 = vmatprep.subr.mxu0 0.0
  %492 = vmatpush1.msra.mxu0 0.0
  %493 = vmatprep.subr.mxu0 0.0
  %494 = vmatpush1.msra.mxu0 0.0
  %495 = vmatprep.subr.mxu0 0.0
  %496 = vmatpush1.msra.mxu0 0.0
  %497 = vmatprep.subr.mxu0 0.0
  %498 = vmatpush1.msra.mxu0 0.0
  %499 = vmatprep.subr.mxu0 0.0
  %500 = vmatpush1.msra.mxu0 0.0
  %501 = vmatprep.subr.mxu0 0.0
  %502 = vmatpush1.msra.mxu0 0.0
  %503 = vmatprep.subr.mxu0 0.0
  %504 = vmatpush1.msra.mxu0 0.0
  %505 = vmatprep.subr.mxu0 0.0
  %506 = vmatpush1.msra.mxu0 0.0
  %507 = vmatprep.subr.mxu0 0.0
  %508 = vmatpush1.msra.mxu0 0.0
  %509 = vmatprep.subr.mxu0 0.0
  %510 = vmatpush1.msra.mxu0 0.0
  %511 = vmatprep.subr.mxu0 0.0
  %512 = vmatpush1.msra.mxu0 0.0
  %513 = vmatprep.subr.mxu0 0.0
  %514 = vmatpush1.msra.mxu0 0.0
  %515 = vmatprep.subr.mxu0 0.0
  %516 = vmatpush1.msra.mxu0 0.0
  %517 = vmatprep.subr.mxu0 0.0
  %518 = vmatpush1.msra.mxu0 0.0
  %519 = vmatprep.subr.mxu0 0.0
  %520 = vmatpush1.msra.mxu0 0.0
  %521 = vmatprep.subr.mxu0 0.0
  %522 = vmatpush1.msra.mxu0 0.0
  %523 = vmatprep.mubr.f32.mxu0 0.0
  %524 = vmatmul.mubr.f32.gmra.mrb[0].mxu0 %v457
  %v525 = vpop.f32.mrb[0].mxu0
  %v526 = vadd.f32 0.0, %v525
  %v527 = vpop.f32.mrb[0].mxu0
  %528 = vdwg.mxu0
  %v529 = vrot.slane %v456, 4
  %v530 = vadd.f32 %v456, %v529
  %v531 = vrot.slane %v530, 2
  %v532 = vadd.f32 %v530, %v531
  %v533 = vrot.slane %v532, 1
  %v534 = vadd.f32 %v532, %v533
  %v535 = vmul.f32 %v534, 0.125
  %v536 = vsub.f32 %v456, %v535
  %v537 = vmul.f32 %v536, %v536
  %v538 = vrot.slane %v537, 4
  %v539 = vadd.f32 %v537, %v538
  %v540 = vrot.slane %v539, 2
  %v541 = vadd.f32 %v539, %v540
  %v542 = vrot.slane %v541, 1
  %v543 = vadd.f32 %v541, %v542
  %v544 = vmul.f32 %v543, 0.125
  %v545 = vadd.f32 %v544, 1e-05
  %v546 = vrsqrt.pop %v545
  %v547 = vmul.f32 %v32, %v546
  %v548 = vrot.slane %v526, 4
  %v549 = vadd.f32 %v526, %v548
  %v550 = vrot.slane %v549, 2
  %v551 = vadd.f32 %v549, %v550
  %v552 = vrot.slane %v551, 1
  %v553 = vadd.f32 %v551, %v552
  %v554 = vmul.f32 %v553, 0.125
  %v555 = vsub.f32 %v526, %v554
  %v556 = vmul.f32 %v555, %v555
  %v557 = vrot.slane %v556, 4
  %v558 = vadd.f32 %v556, %v557
  %v559 = vrot.slane %v558, 2
  %v560 = vadd.f32 %v558, %v559
  %v561 = vrot.slane %v560, 1
  %v562 = vadd.f32 %v560, %v561
  %v563 = vmul.f32 %v562, 0.125
  %v564 = vadd.f32 %v563, 1e-05
  %v565 = vrsqrt.pop %v564
  %v566 = vmul.f32 %v32, %v565
  %v567 = vmul.f32 %v535, %v547
  %v569 = vrot.slane %v567, 6
  %v571 = vsub.f32 %v32, %v569
  %v572 = vmul.f32 %v554, %v566
  %v574 = vrot.slane %v572, 7
  %v576 = vsub.f32 %v571, %v574
  %v577 = vlaneseq
  %v578 = vshrl.u32 %v577, 7
  %v579 = vsub.s32 0, %v578
  %v580 = vrot.slane %v547, %v579
  %v581 = vmul.f32 %v456, %v580
  %v582 = vlaneseq
  %v583 = vshrl.u32 %v582, 7
  %v584 = vsub.s32 1, %v583
  %v585 = vrot.slane %v566, %v584
  %v586 = vmul.f32 %v526, %v585
  %v587 = vadd.f32 %v581, %v586
  %v588 = vlaneseq
  %v589 = vshrl.u32 %v588, 7
  %v590 = vsub.s32 2, %v589
  %v591 = vrot.slane %v576, %v590
  %v592 = vadd.f32 %v587, %v591
  %v593 = vmul.f32 %v592, 0.5
  %v594 = vtanh.pop %v593
  %v595 = vmul.f32 %v594, 0.5
  %v596 = vadd.f32 %v595, 0.5
  %v597 = vmul.f32 %v596, %v401
  %v598 = vtanh.pop %v592
  %600 = vrot.lane.b32.xlu0 %v598, 64
  %v601 = vpop.permute.xlu0 %600
  %v603 = vmul.f32 %v596, %v601
  %605 = vrot.lane.b32.xlu0 %v603, 96
  %v606 = vpop.permute.xlu0 %605
  %v608 = vadd.f32 %v597, %v606
  %v609 = vsel %vm41, %v608, 0.0
  %v610 = vrot.slane %v609, 4
  %v611 = vadd.f32 %v609, %v610
  %v612 = vrot.slane %v611, 2
  %v613 = vadd.f32 %v611, %v612
  %v614 = vrot.slane %v613, 1
  %v615 = vadd.f32 %v613, %v614
  %v616 = vmul.f32 %v615, 0.125
  %v617 = vsub.f32 %v608, %v616
  %v618 = vmul.f32 %v617, %v617
  %v619 = vsel %vm41, %v618, 0.0
  %v620 = vrot.slane %v619, 4
  %v621 = vadd.f32 %v619, %v620
  %v622 = vrot.slane %v621, 2
  %v623 = vadd.f32 %v621, %v622
  %v624 = vrot.slane %v623, 1
  %v625 = vadd.f32 %v623, %v624
  %v626 = vmul.f32 %v625, 0.125
  %v627 = vadd.f32 %v626, 1e-05
  %v628 = vrsqrt.pop %v627
  %v629 = vmul.f32 %v33, %v628
  %v630 = vlaneseq
  %v631 = vshrl.u32 %v630, 7
  %v632 = vsub.s32 0, %v631
  %v633 = vrot.slane %v629, %v632
  %v634 = vmul.f32 %v608, %v633
  %v635 = vmul.f32 %v616, %v629
  %v637 = vrot.slane %v635, 7
  %v639 = vsub.f32 %v33, %v637
  %v640 = vlaneseq
  %v641 = vshrl.u32 %v640, 7
  %v642 = vsub.s32 1, %v641
  %v643 = vrot.slane %v639, %v642
  %v644 = vadd.f32 %v634, %v643
  %v645 = vtanh.pop %v644
  %647 = vrot.lane.b32.xlu0 %v645, 64
  %v648 = vpop.permute.xlu0 %647
  %v650 = vmul.f32 %v596, %v648
  %652 = vrot.lane.b32.xlu0 %v650, 64
  %v653 = vpop.permute.xlu0 %652
  %s655 = scalar_lea.vmem %s6, 16
  %656 = vst.msk [vmem:[%s655] sm:$0xff] %vm41, %v653
  %658 = vrot.lane.b32.xlu0 %v608, 32
  %v659 = vpop.permute.xlu0 %658
  %661 = vst.msk [vmem:[%s655] sm:$0xff] %vm246, %v659
  %s662 = scalar_lea.vmem %s0, 24
  %v663 = vld [vmem:[%s662] sm:$0xff]
  %v664 = vsel %vm41, %v653, 0
  %666 = vmatprep.subr.mxu0 0.0
  %667 = vmatpush1.msra.mxu0 %v34
  %668 = vmatprep.subr.mxu0 0.0
  %669 = vmatpush1.msra.mxu0 %v35
  %670 = vmatprep.subr.mxu0 0.0
  %671 = vmatpush1.msra.mxu0 %v36
  %672 = vmatprep.subr.mxu0 0.0
  %673 = vmatpush1.msra.mxu0 %v37
  %674 = vmatprep.subr.mxu0 0.0
  %675 = vmatpush1.msra.mxu0 0.0
  %676 = vmatprep.subr.mxu0 0.0
  %677 = vmatpush1.msra.mxu0 0.0
  %678 = vmatprep.subr.mxu0 0.0
  %679 = vmatpush1.msra.mxu0 0.0
  %680 = vmatprep.subr.mxu0 0.0
  %681 = vmatpush1.msra.mxu0 0.0
  %682 = vmatprep.subr.mxu0 0.0
  %683 = vmatpush1.msra.mxu0 0.0
  %684 = vmatprep.subr.mxu0 0.0
  %685 = vmatpush1.msra.mxu0 0.0
  %686 = vmatprep.subr.mxu0 0.0
  %687 = vmatpush1.msra.mxu0 0.0
  %688 = vmatprep.subr.mxu0 0.0
  %689 = vmatpush1.msra.mxu0 0.0
  %690 = vmatprep.subr.mxu0 0.0
  %691 = vmatpush1.msra.mxu0 0.0
  %692 = vmatprep.subr.mxu0 0.0
  %693 = vmatpush1.msra.mxu0 0.0
  %694 = vmatprep.subr.mxu0 0.0
  %695 = vmatpush1.msra.mxu0 0.0
  %696 = vmatprep.subr.mxu0 0.0
  %697 = vmatpush1.msra.mxu0 0.0
  %698 = vmatprep.subr.mxu0 0.0
  %699 = vmatpush1.msra.mxu0 0.0
  %700 = vmatprep.subr.mxu0 0.0
  %701 = vmatpush1.msra.mxu0 0.0
  %702 = vmatprep.subr.mxu0 0.0
  %703 = vmatpush1.msra.mxu0 0.0
  %704 = vmatprep.subr.mxu0 0.0
  %705 = vmatpush1.msra.mxu0 0.0
  %706 = vmatprep.subr.mxu0 0.0
  %707 = vmatpush1.msra.mxu0 0.0
  %708 = vmatprep.subr.mxu0 0.0
  %709 = vmatpush1.msra.mxu0 0.0
  %710 = vmatprep.subr.mxu0 0.0
  %711 = vmatpush1.msra.mxu0 0.0
  %712 = vmatprep.subr.mxu0 0.0
  %713 = vmatpush1.msra.mxu0 0.0
  %714 = vmatprep.subr.mxu0 0.0
  %715 = vmatpush1.msra.mxu0 0.0
  %716 = vmatprep.subr.mxu0 0.0
  %717 = vmatpush1.msra.mxu0 0.0
  %718 = vmatprep.subr.mxu0 0.0
  %719 = vmatpush1.msra.mxu0 0.0
  %720 = vmatprep.subr.mxu0 0.0
  %721 = vmatpush1.msra.mxu0 0.0
  %722 = vmatprep.subr.mxu0 0.0
  %723 = vmatpush1.msra.mxu0 0.0
  %724 = vmatprep.subr.mxu0 0.0
  %725 = vmatpush1.msra.mxu0 0.0
  %726 = vmatprep.subr.mxu0 0.0
  %727 = vmatpush1.msra.mxu0 0.0
  %728 = vmatprep.subr.mxu0 0.0
  %729 = vmatpush1.msra.mxu0 0.0
  %730 = vmatprep.mubr.f32.mxu0 0.0
  %731 = vmatmul.mubr.f32.gmra.mrb[0].mxu0 %v664
  %v732 = vpop.f32.mrb[0].mxu0
  %v733 = vadd.f32 0.0, %v732
  %v734 = vpop.f32.mrb[0].mxu0
  %735 = vdwg.mxu0
  %v736 = vrot.slane %v663, 4
  %v737 = vadd.f32 %v663, %v736
  %v738 = vrot.slane %v737, 2
  %v739 = vadd.f32 %v737, %v738
  %v740 = vrot.slane %v739, 1
  %v741 = vadd.f32 %v739, %v740
  %v742 = vmul.f32 %v741, 0.125
  %v743 = vsub.f32 %v663, %v742
  %v744 = vmul.f32 %v743, %v743
  %v745 = vrot.slane %v744, 4
  %v746 = vadd.f32 %v744, %v745
  %v747 = vrot.slane %v746, 2
  %v748 = vadd.f32 %v746, %v747
  %v749 = vrot.slane %v748, 1
  %v750 = vadd.f32 %v748, %v749
  %v751 = vmul.f32 %v750, 0.125
  %v752 = vadd.f32 %v751, 1e-05
  %v753 = vrsqrt.pop %v752
  %v754 = vmul.f32 %v32, %v753
  %v755 = vrot.slane %v733, 4
  %v756 = vadd.f32 %v733, %v755
  %v757 = vrot.slane %v756, 2
  %v758 = vadd.f32 %v756, %v757
  %v759 = vrot.slane %v758, 1
  %v760 = vadd.f32 %v758, %v759
  %v761 = vmul.f32 %v760, 0.125
  %v762 = vsub.f32 %v733, %v761
  %v763 = vmul.f32 %v762, %v762
  %v764 = vrot.slane %v763, 4
  %v765 = vadd.f32 %v763, %v764
  %v766 = vrot.slane %v765, 2
  %v767 = vadd.f32 %v765, %v766
  %v768 = vrot.slane %v767, 1
  %v769 = vadd.f32 %v767, %v768
  %v770 = vmul.f32 %v769, 0.125
  %v771 = vadd.f32 %v770, 1e-05
  %v772 = vrsqrt.pop %v771
  %v773 = vmul.f32 %v32, %v772
  %v774 = vmul.f32 %v742, %v754
  %v776 = vrot.slane %v774, 6
  %v778 = vsub.f32 %v32, %v776
  %v779 = vmul.f32 %v761, %v773
  %v781 = vrot.slane %v779, 7
  %v783 = vsub.f32 %v778, %v781
  %v784 = vlaneseq
  %v785 = vshrl.u32 %v784, 7
  %v786 = vsub.s32 0, %v785
  %v787 = vrot.slane %v754, %v786
  %v788 = vmul.f32 %v663, %v787
  %v789 = vlaneseq
  %v790 = vshrl.u32 %v789, 7
  %v791 = vsub.s32 1, %v790
  %v792 = vrot.slane %v773, %v791
  %v793 = vmul.f32 %v733, %v792
  %v794 = vadd.f32 %v788, %v793
  %v795 = vlaneseq
  %v796 = vshrl.u32 %v795, 7
  %v797 = vsub.s32 2, %v796
  %v798 = vrot.slane %v783, %v797
  %v799 = vadd.f32 %v794, %v798
  %v800 = vmul.f32 %v799, 0.5
  %v801 = vtanh.pop %v800
  %v802 = vmul.f32 %v801, 0.5
  %v803 = vadd.f32 %v802, 0.5
  %v804 = vmul.f32 %v803, %v608
  %v805 = vtanh.pop %v799
  %807 = vrot.lane.b32.xlu0 %v805, 64
  %v808 = vpop.permute.xlu0 %807
  %v810 = vmul.f32 %v803, %v808
  %812 = vrot.lane.b32.xlu0 %v810, 96
  %v813 = vpop.permute.xlu0 %812
  %v815 = vadd.f32 %v804, %v813
  %v816 = vsel %vm41, %v815, 0.0
  %v817 = vrot.slane %v816, 4
  %v818 = vadd.f32 %v816, %v817
  %v819 = vrot.slane %v818, 2
  %v820 = vadd.f32 %v818, %v819
  %v821 = vrot.slane %v820, 1
  %v822 = vadd.f32 %v820, %v821
  %v823 = vmul.f32 %v822, 0.125
  %v824 = vsub.f32 %v815, %v823
  %v825 = vmul.f32 %v824, %v824
  %v826 = vsel %vm41, %v825, 0.0
  %v827 = vrot.slane %v826, 4
  %v828 = vadd.f32 %v826, %v827
  %v829 = vrot.slane %v828, 2
  %v830 = vadd.f32 %v828, %v829
  %v831 = vrot.slane %v830, 1
  %v832 = vadd.f32 %v830, %v831
  %v833 = vmul.f32 %v832, 0.125
  %v834 = vadd.f32 %v833, 1e-05
  %v835 = vrsqrt.pop %v834
  %v836 = vmul.f32 %v33, %v835
  %v837 = vlaneseq
  %v838 = vshrl.u32 %v837, 7
  %v839 = vsub.s32 0, %v838
  %v840 = vrot.slane %v836, %v839
  %v841 = vmul.f32 %v815, %v840
  %v842 = vmul.f32 %v823, %v836
  %v844 = vrot.slane %v842, 7
  %v846 = vsub.f32 %v33, %v844
  %v847 = vlaneseq
  %v848 = vshrl.u32 %v847, 7
  %v849 = vsub.s32 1, %v848
  %v850 = vrot.slane %v846, %v849
  %v851 = vadd.f32 %v841, %v850
  %v852 = vtanh.pop %v851
  %854 = vrot.lane.b32.xlu0 %v852, 64
  %v855 = vpop.permute.xlu0 %854
  %v857 = vmul.f32 %v803, %v855
  %859 = vrot.lane.b32.xlu0 %v857, 64
  %v860 = vpop.permute.xlu0 %859
  %s862 = scalar_lea.vmem %s6, 24
  %863 = vst.msk [vmem:[%s862] sm:$0xff] %vm41, %v860
  %865 = vrot.lane.b32.xlu0 %v815, 32
  %v866 = vpop.permute.xlu0 %865
  %868 = vst.msk [vmem:[%s862] sm:$0xff] %vm246, %v866
  %s869 = scalar_lea.vmem %s0, 32
  %v870 = vld [vmem:[%s869] sm:$0xff]
  %v871 = vsel %vm41, %v860, 0
  %873 = vmatprep.subr.mxu0 0.0
  %874 = vmatpush1.msra.mxu0 %v34
  %875 = vmatprep.subr.mxu0 0.0
  %876 = vmatpush1.msra.mxu0 %v35
  %877 = vmatprep.subr.mxu0 0.0
  %878 = vmatpush1.msra.mxu0 %v36
  %879 = vmatprep.subr.mxu0 0.0
  %880 = vmatpush1.msra.mxu0 %v37
  %881 = vmatprep.subr.mxu0 0.0
  %882 = vmatpush1.msra.mxu0 0.0
  %883 = vmatprep.subr.mxu0 0.0
  %884 = vmatpush1.msra.mxu0 0.0
  %885 = vmatprep.subr.mxu0 0.0
  %886 = vmatpush1.msra.mxu0 0.0
  %887 = vmatprep.subr.mxu0 0.0
  %888 = vmatpush1.msra.mxu0 0.0
  %889 = vmatprep.subr.mxu0 0.0
  %890 = vmatpush1.msra.mxu0 0.0
  %891 = vmatprep.subr.mxu0 0.0
  %892 = vmatpush1.msra.mxu0 0.0
  %893 = vmatprep.subr.mxu0 0.0
  %894 = vmatpush1.msra.mxu0 0.0
  %895 = vmatprep.subr.mxu0 0.0
  %896 = vmatpush1.msra.mxu0 0.0
  %897 = vmatprep.subr.mxu0 0.0
  %898 = vmatpush1.msra.mxu0 0.0
  %899 = vmatprep.subr.mxu0 0.0
  %900 = vmatpush1.msra.mxu0 0.0
  %901 = vmatprep.subr.mxu0 0.0
  %902 = vmatpush1.msra.mxu0 0.0
  %903 = vmatprep.subr.mxu0 0.0
  %904 = vmatpush1.msra.mxu0 0.0
  %905 = vmatprep.subr.mxu0 0.0
  %906 = vmatpush1.msra.mxu0 0.0
  %907 = vmatprep.subr.mxu0 0.0
  %908 = vmatpush1.msra.mxu0 0.0
  %909 = vmatprep.subr.mxu0 0.0
  %910 = vmatpush1.msra.mxu0 0.0
  %911 = vmatprep.subr.mxu0 0.0
  %912 = vmatpush1.msra.mxu0 0.0
  %913 = vmatprep.subr.mxu0 0.0
  %914 = vmatpush1.msra.mxu0 0.0
  %915 = vmatprep.subr.mxu0 0.0
  %916 = vmatpush1.msra.mxu0 0.0
  %917 = vmatprep.subr.mxu0 0.0
  %918 = vmatpush1.msra.mxu0 0.0
  %919 = vmatprep.subr.mxu0 0.0
  %920 = vmatpush1.msra.mxu0 0.0
  %921 = vmatprep.subr.mxu0 0.0
  %922 = vmatpush1.msra.mxu0 0.0
  %923 = vmatprep.subr.mxu0 0.0
  %924 = vmatpush1.msra.mxu0 0.0
  %925 = vmatprep.subr.mxu0 0.0
  %926 = vmatpush1.msra.mxu0 0.0
  %927 = vmatprep.subr.mxu0 0.0
  %928 = vmatpush1.msra.mxu0 0.0
  %929 = vmatprep.subr.mxu0 0.0
  %930 = vmatpush1.msra.mxu0 0.0
  %931 = vmatprep.subr.mxu0 0.0
  %932 = vmatpush1.msra.mxu0 0.0
  %933 = vmatprep.subr.mxu0 0.0
  %934 = vmatpush1.msra.mxu0 0.0
  %935 = vmatprep.subr.mxu0 0.0
  %936 = vmatpush1.msra.mxu0 0.0
  %937 = vmatprep.mubr.f32.mxu0 0.0
  %938 = vmatmul.mubr.f32.gmra.mrb[0].mxu0 %v871
  %v939 = vpop.f32.mrb[0].mxu0
  %v940 = vadd.f32 0.0, %v939
  %v941 = vpop.f32.mrb[0].mxu0
  %942 = vdwg.mxu0
  %v943 = vrot.slane %v870, 4
  %v944 = vadd.f32 %v870, %v943
  %v945 = vrot.slane %v944, 2
  %v946 = vadd.f32 %v944, %v945
  %v947 = vrot.slane %v946, 1
  %v948 = vadd.f32 %v946, %v947
  %v949 = vmul.f32 %v948, 0.125
  %v950 = vsub.f32 %v870, %v949
  %v951 = vmul.f32 %v950, %v950
  %v952 = vrot.slane %v951, 4
  %v953 = vadd.f32 %v951, %v952
  %v954 = vrot.slane %v953, 2
  %v955 = vadd.f32 %v953, %v954
  %v956 = vrot.slane %v955, 1
  %v957 = vadd.f32 %v955, %v956
  %v958 = vmul.f32 %v957, 0.125
  %v959 = vadd.f32 %v958, 1e-05
  %v960 = vrsqrt.pop %v959
  %v961 = vmul.f32 %v32, %v960
  %v962 = vrot.slane %v940, 4
  %v963 = vadd.f32 %v940, %v962
  %v964 = vrot.slane %v963, 2
  %v965 = vadd.f32 %v963, %v964
  %v966 = vrot.slane %v965, 1
  %v967 = vadd.f32 %v965, %v966
  %v968 = vmul.f32 %v967, 0.125
  %v969 = vsub.f32 %v940, %v968
  %v970 = vmul.f32 %v969, %v969
  %v971 = vrot.slane %v970, 4
  %v972 = vadd.f32 %v970, %v971
  %v973 = vrot.slane %v972, 2
  %v974 = vadd.f32 %v972, %v973
  %v975 = vrot.slane %v974, 1
  %v976 = vadd.f32 %v974, %v975
  %v977 = vmul.f32 %v976, 0.125
  %v978 = vadd.f32 %v977, 1e-05
  %v979 = vrsqrt.pop %v978
  %v980 = vmul.f32 %v32, %v979
  %v981 = vmul.f32 %v949, %v961
  %v983 = vrot.slane %v981, 6
  %v985 = vsub.f32 %v32, %v983
  %v986 = vmul.f32 %v968, %v980
  %v988 = vrot.slane %v986, 7
  %v990 = vsub.f32 %v985, %v988
  %v991 = vlaneseq
  %v992 = vshrl.u32 %v991, 7
  %v993 = vsub.s32 0, %v992
  %v994 = vrot.slane %v961, %v993
  %v995 = vmul.f32 %v870, %v994
  %v996 = vlaneseq
  %v997 = vshrl.u32 %v996, 7
  %v998 = vsub.s32 1, %v997
  %v999 = vrot.slane %v980, %v998
  %v1000 = vmul.f32 %v940, %v999
  %v1001 = vadd.f32 %v995, %v1000
  %v1002 = vlaneseq
  %v1003 = vshrl.u32 %v1002, 7
  %v1004 = vsub.s32 2, %v1003
  %v1005 = vrot.slane %v990, %v1004
  %v1006 = vadd.f32 %v1001, %v1005
  %v1007 = vmul.f32 %v1006, 0.5
  %v1008 = vtanh.pop %v1007
  %v1009 = vmul.f32 %v1008, 0.5
  %v1010 = vadd.f32 %v1009, 0.5
  %v1011 = vmul.f32 %v1010, %v815
  %v1012 = vtanh.pop %v1006
  %1014 = vrot.lane.b32.xlu0 %v1012, 64
  %v1015 = vpop.permute.xlu0 %1014
  %v1017 = vmul.f32 %v1010, %v1015
  %1019 = vrot.lane.b32.xlu0 %v1017, 96
  %v1020 = vpop.permute.xlu0 %1019
  %v1022 = vadd.f32 %v1011, %v1020
  %v1023 = vsel %vm41, %v1022, 0.0
  %v1024 = vrot.slane %v1023, 4
  %v1025 = vadd.f32 %v1023, %v1024
  %v1026 = vrot.slane %v1025, 2
  %v1027 = vadd.f32 %v1025, %v1026
  %v1028 = vrot.slane %v1027, 1
  %v1029 = vadd.f32 %v1027, %v1028
  %v1030 = vmul.f32 %v1029, 0.125
  %v1031 = vsub.f32 %v1022, %v1030
  %v1032 = vmul.f32 %v1031, %v1031
  %v1033 = vsel %vm41, %v1032, 0.0
  %v1034 = vrot.slane %v1033, 4
  %v1035 = vadd.f32 %v1033, %v1034
  %v1036 = vrot.slane %v1035, 2
  %v1037 = vadd.f32 %v1035, %v1036
  %v1038 = vrot.slane %v1037, 1
  %v1039 = vadd.f32 %v1037, %v1038
  %v1040 = vmul.f32 %v1039, 0.125
  %v1041 = vadd.f32 %v1040, 1e-05
  %v1042 = vrsqrt.pop %v1041
  %v1043 = vmul.f32 %v33, %v1042
  %v1044 = vlaneseq
  %v1045 = vshrl.u32 %v1044, 7
  %v1046 = vsub.s32 0, %v1045
  %v1047 = vrot.slane %v1043, %v1046
  %v1048 = vmul.f32 %v1022, %v1047
  %v1049 = vmul.f32 %v1030, %v1043
  %v1051 = vrot.slane %v1049, 7
  %v1053 = vsub.f32 %v33, %v1051
  %v1054 = vlaneseq
  %v1055 = vshrl.u32 %v1054, 7
  %v1056 = vsub.s32 1, %v1055
  %v1057 = vrot.slane %v1053, %v1056
  %v1058 = vadd.f32 %v1048, %v1057
  %v1059 = vtanh.pop %v1058
  %1061 = vrot.lane.b32.xlu0 %v1059, 64
  %v1062 = vpop.permute.xlu0 %1061
  %v1064 = vmul.f32 %v1010, %v1062
  %1066 = vrot.lane.b32.xlu0 %v1064, 64
  %v1067 = vpop.permute.xlu0 %1066
  %s1069 = scalar_lea.vmem %s6, 32
  %1070 = vst.msk [vmem:[%s1069] sm:$0xff] %vm41, %v1067
  %1072 = vrot.lane.b32.xlu0 %v1022, 32
  %v1073 = vpop.permute.xlu0 %1072
  %1075 = vst.msk [vmem:[%s1069] sm:$0xff] %vm246, %v1073
  %s1076 = scalar_lea.vmem %s0, 40
  %v1077 = vld [vmem:[%s1076] sm:$0xff]
  %v1078 = vsel %vm41, %v1067, 0
  %1080 = vmatprep.subr.mxu0 0.0
  %1081 = vmatpush1.msra.mxu0 %v34
  %1082 = vmatprep.subr.mxu0 0.0
  %1083 = vmatpush1.msra.mxu0 %v35
  %1084 = vmatprep.subr.mxu0 0.0
  %1085 = vmatpush1.msra.mxu0 %v36
  %1086 = vmatprep.subr.mxu0 0.0
  %1087 = vmatpush1.msra.mxu0 %v37
  %1088 = vmatprep.subr.mxu0 0.0
  %1089 = vmatpush1.msra.mxu0 0.0
  %1090 = vmatprep.subr.mxu0 0.0
  %1091 = vmatpush1.msra.mxu0 0.0
  %1092 = vmatprep.subr.mxu0 0.0
  %1093 = vmatpush1.msra.mxu0 0.0
  %1094 = vmatprep.subr.mxu0 0.0
  %1095 = vmatpush1.msra.mxu0 0.0
  %1096 = vmatprep.subr.mxu0 0.0
  %1097 = vmatpush1.msra.mxu0 0.0
  %1098 = vmatprep.subr.mxu0 0.0
  %1099 = vmatpush1.msra.mxu0 0.0
  %1100 = vmatprep.subr.mxu0 0.0
  %1101 = vmatpush1.msra.mxu0 0.0
  %1102 = vmatprep.subr.mxu0 0.0
  %1103 = vmatpush1.msra.mxu0 0.0
  %1104 = vmatprep.subr.mxu0 0.0
  %1105 = vmatpush1.msra.mxu0 0.0
  %1106 = vmatprep.subr.mxu0 0.0
  %1107 = vmatpush1.msra.mxu0 0.0
  %1108 = vmatprep.subr.mxu0 0.0
  %1109 = vmatpush1.msra.mxu0 0.0
  %1110 = vmatprep.subr.mxu0 0.0
  %1111 = vmatpush1.msra.mxu0 0.0
  %1112 = vmatprep.subr.mxu0 0.0
  %1113 = vmatpush1.msra.mxu0 0.0
  %1114 = vmatprep.subr.mxu0 0.0
  %1115 = vmatpush1.msra.mxu0 0.0
  %1116 = vmatprep.subr.mxu0 0.0
  %1117 = vmatpush1.msra.mxu0 0.0
  %1118 = vmatprep.subr.mxu0 0.0
  %1119 = vmatpush1.msra.mxu0 0.0
  %1120 = vmatprep.subr.mxu0 0.0
  %1121 = vmatpush1.msra.mxu0 0.0
  %1122 = vmatprep.subr.mxu0 0.0
  %1123 = vmatpush1.msra.mxu0 0.0
  %1124 = vmatprep.subr.mxu0 0.0
  %1125 = vmatpush1.msra.mxu0 0.0
  %1126 = vmatprep.subr.mxu0 0.0
  %1127 = vmatpush1.msra.mxu0 0.0
  %1128 = vmatprep.subr.mxu0 0.0
  %1129 = vmatpush1.msra.mxu0 0.0
  %1130 = vmatprep.subr.mxu0 0.0
  %1131 = vmatpush1.msra.mxu0 0.0
  %1132 = vmatprep.subr.mxu0 0.0
  %1133 = vmatpush1.msra.mxu0 0.0
  %1134 = vmatprep.subr.mxu0 0.0
  %1135 = vmatpush1.msra.mxu0 0.0
  %1136 = vmatprep.subr.mxu0 0.0
  %1137 = vmatpush1.msra.mxu0 0.0
  %1138 = vmatprep.subr.mxu0 0.0
  %1139 = vmatpush1.msra.mxu0 0.0
  %1140 = vmatprep.subr.mxu0 0.0
  %1141 = vmatpush1.msra.mxu0 0.0
  %1142 = vmatprep.subr.mxu0 0.0
  %1143 = vmatpush1.msra.mxu0 0.0
  %1144 = vmatprep.mubr.f32.mxu0 0.0
  %1145 = vmatmul.mubr.f32.gmra.mrb[0].mxu0 %v1078
  %v1146 = vpop.f32.mrb[0].mxu0
  %v1147 = vadd.f32 0.0, %v1146
  %v1148 = vpop.f32.mrb[0].mxu0
  %1149 = vdwg.mxu0
  %v1150 = vrot.slane %v1077, 4
  %v1151 = vadd.f32 %v1077, %v1150
  %v1152 = vrot.slane %v1151, 2
  %v1153 = vadd.f32 %v1151, %v1152
  %v1154 = vrot.slane %v1153, 1
  %v1155 = vadd.f32 %v1153, %v1154
  %v1156 = vmul.f32 %v1155, 0.125
  %v1157 = vsub.f32 %v1077, %v1156
  %v1158 = vmul.f32 %v1157, %v1157
  %v1159 = vrot.slane %v1158, 4
  %v1160 = vadd.f32 %v1158, %v1159
  %v1161 = vrot.slane %v1160, 2
  %v1162 = vadd.f32 %v1160, %v1161
  %v1163 = vrot.slane %v1162, 1
  %v1164 = vadd.f32 %v1162, %v1163
  %v1165 = vmul.f32 %v1164, 0.125
  %v1166 = vadd.f32 %v1165, 1e-05
  %v1167 = vrsqrt.pop %v1166
  %v1168 = vmul.f32 %v32, %v1167
  %v1169 = vrot.slane %v1147, 4
  %v1170 = vadd.f32 %v1147, %v1169
  %v1171 = vrot.slane %v1170, 2
  %v1172 = vadd.f32 %v1170, %v1171
  %v1173 = vrot.slane %v1172, 1
  %v1174 = vadd.f32 %v1172, %v1173
  %v1175 = vmul.f32 %v1174, 0.125
  %v1176 = vsub.f32 %v1147, %v1175
  %v1177 = vmul.f32 %v1176, %v1176
  %v1178 = vrot.slane %v1177, 4
  %v1179 = vadd.f32 %v1177, %v1178
  %v1180 = vrot.slane %v1179, 2
  %v1181 = vadd.f32 %v1179, %v1180
  %v1182 = vrot.slane %v1181, 1
  %v1183 = vadd.f32 %v1181, %v1182
  %v1184 = vmul.f32 %v1183, 0.125
  %v1185 = vadd.f32 %v1184, 1e-05
  %v1186 = vrsqrt.pop %v1185
  %v1187 = vmul.f32 %v32, %v1186
  %v1188 = vmul.f32 %v1156, %v1168
  %v1190 = vrot.slane %v1188, 6
  %v1192 = vsub.f32 %v32, %v1190
  %v1193 = vmul.f32 %v1175, %v1187
  %v1195 = vrot.slane %v1193, 7
  %v1197 = vsub.f32 %v1192, %v1195
  %v1198 = vlaneseq
  %v1199 = vshrl.u32 %v1198, 7
  %v1200 = vsub.s32 0, %v1199
  %v1201 = vrot.slane %v1168, %v1200
  %v1202 = vmul.f32 %v1077, %v1201
  %v1203 = vlaneseq
  %v1204 = vshrl.u32 %v1203, 7
  %v1205 = vsub.s32 1, %v1204
  %v1206 = vrot.slane %v1187, %v1205
  %v1207 = vmul.f32 %v1147, %v1206
  %v1208 = vadd.f32 %v1202, %v1207
  %v1209 = vlaneseq
  %v1210 = vshrl.u32 %v1209, 7
  %v1211 = vsub.s32 2, %v1210
  %v1212 = vrot.slane %v1197, %v1211
  %v1213 = vadd.f32 %v1208, %v1212
  %v1214 = vmul.f32 %v1213, 0.5
  %v1215 = vtanh.pop %v1214
  %v1216 = vmul.f32 %v1215, 0.5
  %v1217 = vadd.f32 %v1216, 0.5
  %v1218 = vmul.f32 %v1217, %v1022
  %v1219 = vtanh.pop %v1213
  %1221 = vrot.lane.b32.xlu0 %v1219, 64
  %v1222 = vpop.permute.xlu0 %1221
  %v1224 = vmul.f32 %v1217, %v1222
  %1226 = vrot.lane.b32.xlu0 %v1224, 96
  %v1227 = vpop.permute.xlu0 %1226
  %v1229 = vadd.f32 %v1218, %v1227
  %v1230 = vsel %vm41, %v1229, 0.0
  %v1231 = vrot.slane %v1230, 4
  %v1232 = vadd.f32 %v1230, %v1231
  %v1233 = vrot.slane %v1232, 2
  %v1234 = vadd.f32 %v1232, %v1233
  %v1235 = vrot.slane %v1234, 1
  %v1236 = vadd.f32 %v1234, %v1235
  %v1237 = vmul.f32 %v1236, 0.125
  %v1238 = vsub.f32 %v1229, %v1237
  %v1239 = vmul.f32 %v1238, %v1238
  %v1240 = vsel %vm41, %v1239, 0.0
  %v1241 = vrot.slane %v1240, 4
  %v1242 = vadd.f32 %v1240, %v1241
  %v1243 = vrot.slane %v1242, 2
  %v1244 = vadd.f32 %v1242, %v1243
  %v1245 = vrot.slane %v1244, 1
  %v1246 = vadd.f32 %v1244, %v1245
  %v1247 = vmul.f32 %v1246, 0.125
  %v1248 = vadd.f32 %v1247, 1e-05
  %v1249 = vrsqrt.pop %v1248
  %v1250 = vmul.f32 %v33, %v1249
  %v1251 = vlaneseq
  %v1252 = vshrl.u32 %v1251, 7
  %v1253 = vsub.s32 0, %v1252
  %v1254 = vrot.slane %v1250, %v1253
  %v1255 = vmul.f32 %v1229, %v1254
  %v1256 = vmul.f32 %v1237, %v1250
  %v1258 = vrot.slane %v1256, 7
  %v1260 = vsub.f32 %v33, %v1258
  %v1261 = vlaneseq
  %v1262 = vshrl.u32 %v1261, 7
  %v1263 = vsub.s32 1, %v1262
  %v1264 = vrot.slane %v1260, %v1263
  %v1265 = vadd.f32 %v1255, %v1264
  %v1266 = vtanh.pop %v1265
  %1268 = vrot.lane.b32.xlu0 %v1266, 64
  %v1269 = vpop.permute.xlu0 %1268
  %v1271 = vmul.f32 %v1217, %v1269
  %1273 = vrot.lane.b32.xlu0 %v1271, 64
  %v1274 = vpop.permute.xlu0 %1273
  %s1276 = scalar_lea.vmem %s6, 40
  %1277 = vst.msk [vmem:[%s1276] sm:$0xff] %vm41, %v1274
  %1279 = vrot.lane.b32.xlu0 %v1229, 32
  %v1280 = vpop.permute.xlu0 %1279
  %1282 = vst.msk [vmem:[%s1276] sm:$0xff] %vm246, %v1280
  %s1283 = scalar_lea.vmem %s0, 48
  %v1284 = vld [vmem:[%s1283] sm:$0xff]
  %v1285 = vsel %vm41, %v1274, 0
  %1287 = vmatprep.subr.mxu0 0.0
  %1288 = vmatpush1.msra.mxu0 %v34
  %1289 = vmatprep.subr.mxu0 0.0
  %1290 = vmatpush1.msra.mxu0 %v35
  %1291 = vmatprep.subr.mxu0 0.0
  %1292 = vmatpush1.msra.mxu0 %v36
  %1293 = vmatprep.subr.mxu0 0.0
  %1294 = vmatpush1.msra.mxu0 %v37
  %1295 = vmatprep.subr.mxu0 0.0
  %1296 = vmatpush1.msra.mxu0 0.0
  %1297 = vmatprep.subr.mxu0 0.0
  %1298 = vmatpush1.msra.mxu0 0.0
  %1299 = vmatprep.subr.mxu0 0.0
  %1300 = vmatpush1.msra.mxu0 0.0
  %1301 = vmatprep.subr.mxu0 0.0
  %1302 = vmatpush1.msra.mxu0 0.0
  %1303 = vmatprep.subr.mxu0 0.0
  %1304 = vmatpush1.msra.mxu0 0.0
  %1305 = vmatprep.subr.mxu0 0.0
  %1306 = vmatpush1.msra.mxu0 0.0
  %1307 = vmatprep.subr.mxu0 0.0
  %1308 = vmatpush1.msra.mxu0 0.0
  %1309 = vmatprep.subr.mxu0 0.0
  %1310 = vmatpush1.msra.mxu0 0.0
  %1311 = vmatprep.subr.mxu0 0.0
  %1312 = vmatpush1.msra.mxu0 0.0
  %1313 = vmatprep.subr.mxu0 0.0
  %1314 = vmatpush1.msra.mxu0 0.0
  %1315 = vmatprep.subr.mxu0 0.0
  %1316 = vmatpush1.msra.mxu0 0.0
  %1317 = vmatprep.subr.mxu0 0.0
  %1318 = vmatpush1.msra.mxu0 0.0
  %1319 = vmatprep.subr.mxu0 0.0
  %1320 = vmatpush1.msra.mxu0 0.0
  %1321 = vmatprep.subr.mxu0 0.0
  %1322 = vmatpush1.msra.mxu0 0.0
  %1323 = vmatprep.subr.mxu0 0.0
  %1324 = vmatpush1.msra.mxu0 0.0
  %1325 = vmatprep.subr.mxu0 0.0
  %1326 = vmatpush1.msra.mxu0 0.0
  %1327 = vmatprep.subr.mxu0 0.0
  %1328 = vmatpush1.msra.mxu0 0.0
  %1329 = vmatprep.subr.mxu0 0.0
  %1330 = vmatpush1.msra.mxu0 0.0
  %1331 = vmatprep.subr.mxu0 0.0
  %1332 = vmatpush1.msra.mxu0 0.0
  %1333 = vmatprep.subr.mxu0 0.0
  %1334 = vmatpush1.msra.mxu0 0.0
  %1335 = vmatprep.subr.mxu0 0.0
  %1336 = vmatpush1.msra.mxu0 0.0
  %1337 = vmatprep.subr.mxu0 0.0
  %1338 = vmatpush1.msra.mxu0 0.0
  %1339 = vmatprep.subr.mxu0 0.0
  %1340 = vmatpush1.msra.mxu0 0.0
  %1341 = vmatprep.subr.mxu0 0.0
  %1342 = vmatpush1.msra.mxu0 0.0
  %1343 = vmatprep.subr.mxu0 0.0
  %1344 = vmatpush1.msra.mxu0 0.0
  %1345 = vmatprep.subr.mxu0 0.0
  %1346 = vmatpush1.msra.mxu0 0.0
  %1347 = vmatprep.subr.mxu0 0.0
  %1348 = vmatpush1.msra.mxu0 0.0
  %1349 = vmatprep.subr.mxu0 0.0
  %1350 = vmatpush1.msra.mxu0 0.0
  %1351 = vmatprep.mubr.f32.mxu0 0.0
  %1352 = vmatmul.mubr.f32.gmra.mrb[0].mxu0 %v1285
  %v1353 = vpop.f32.mrb[0].mxu0
  %v1354 = vadd.f32 0.0, %v1353
  %v1355 = vpop.f32.mrb[0].mxu0
  %1356 = vdwg.mxu0
  %v1357 = vrot.slane %v1284, 4
  %v1358 = vadd.f32 %v1284, %v1357
  %v1359 = vrot.slane %v1358, 2
  %v1360 = vadd.f32 %v1358, %v1359
  %v1361 = vrot.slane %v1360, 1
  %v1362 = vadd.f32 %v1360, %v1361
  %v1363 = vmul.f32 %v1362, 0.125
  %v1364 = vsub.f32 %v1284, %v1363
  %v1365 = vmul.f32 %v1364, %v1364
  %v1366 = vrot.slane %v1365, 4
  %v1367 = vadd.f32 %v1365, %v1366
  %v1368 = vrot.slane %v1367, 2
  %v1369 = vadd.f32 %v1367, %v1368
  %v1370 = vrot.slane %v1369, 1
  %v1371 = vadd.f32 %v1369, %v1370
  %v1372 = vmul.f32 %v1371, 0.125
  %v1373 = vadd.f32 %v1372, 1e-05
  %v1374 = vrsqrt.pop %v1373
  %v1375 = vmul.f32 %v32, %v1374
  %v1376 = vrot.slane %v1354, 4
  %v1377 = vadd.f32 %v1354, %v1376
  %v1378 = vrot.slane %v1377, 2
  %v1379 = vadd.f32 %v1377, %v1378
  %v1380 = vrot.slane %v1379, 1
  %v1381 = vadd.f32 %v1379, %v1380
  %v1382 = vmul.f32 %v1381, 0.125
  %v1383 = vsub.f32 %v1354, %v1382
  %v1384 = vmul.f32 %v1383, %v1383
  %v1385 = vrot.slane %v1384, 4
  %v1386 = vadd.f32 %v1384, %v1385
  %v1387 = vrot.slane %v1386, 2
  %v1388 = vadd.f32 %v1386, %v1387
  %v1389 = vrot.slane %v1388, 1
  %v1390 = vadd.f32 %v1388, %v1389
  %v1391 = vmul.f32 %v1390, 0.125
  %v1392 = vadd.f32 %v1391, 1e-05
  %v1393 = vrsqrt.pop %v1392
  %v1394 = vmul.f32 %v32, %v1393
  %v1395 = vmul.f32 %v1363, %v1375
  %v1397 = vrot.slane %v1395, 6
  %v1399 = vsub.f32 %v32, %v1397
  %v1400 = vmul.f32 %v1382, %v1394
  %v1402 = vrot.slane %v1400, 7
  %v1404 = vsub.f32 %v1399, %v1402
  %v1405 = vlaneseq
  %v1406 = vshrl.u32 %v1405, 7
  %v1407 = vsub.s32 0, %v1406
  %v1408 = vrot.slane %v1375, %v1407
  %v1409 = vmul.f32 %v1284, %v1408
  %v1410 = vlaneseq
  %v1411 = vshrl.u32 %v1410, 7
  %v1412 = vsub.s32 1, %v1411
  %v1413 = vrot.slane %v1394, %v1412
  %v1414 = vmul.f32 %v1354, %v1413
  %v1415 = vadd.f32 %v1409, %v1414
  %v1416 = vlaneseq
  %v1417 = vshrl.u32 %v1416, 7
  %v1418 = vsub.s32 2, %v1417
  %v1419 = vrot.slane %v1404, %v1418
  %v1420 = vadd.f32 %v1415, %v1419
  %v1421 = vmul.f32 %v1420, 0.5
  %v1422 = vtanh.pop %v1421
  %v1423 = vmul.f32 %v1422, 0.5
  %v1424 = vadd.f32 %v1423, 0.5
  %v1425 = vmul.f32 %v1424, %v1229
  %v1426 = vtanh.pop %v1420
  %1428 = vrot.lane.b32.xlu0 %v1426, 64
  %v1429 = vpop.permute.xlu0 %1428
  %v1431 = vmul.f32 %v1424, %v1429
  %1433 = vrot.lane.b32.xlu0 %v1431, 96
  %v1434 = vpop.permute.xlu0 %1433
  %v1436 = vadd.f32 %v1425, %v1434
  %v1437 = vsel %vm41, %v1436, 0.0
  %v1438 = vrot.slane %v1437, 4
  %v1439 = vadd.f32 %v1437, %v1438
  %v1440 = vrot.slane %v1439, 2
  %v1441 = vadd.f32 %v1439, %v1440
  %v1442 = vrot.slane %v1441, 1
  %v1443 = vadd.f32 %v1441, %v1442
  %v1444 = vmul.f32 %v1443, 0.125
  %v1445 = vsub.f32 %v1436, %v1444
  %v1446 = vmul.f32 %v1445, %v1445
  %v1447 = vsel %vm41, %v1446, 0.0
  %v1448 = vrot.slane %v1447, 4
  %v1449 = vadd.f32 %v1447, %v1448
  %v1450 = vrot.slane %v1449, 2
  %v1451 = vadd.f32 %v1449, %v1450
  %v1452 = vrot.slane %v1451, 1
  %v1453 = vadd.f32 %v1451, %v1452
  %v1454 = vmul.f32 %v1453, 0.125
  %v1455 = vadd.f32 %v1454, 1e-05
  %v1456 = vrsqrt.pop %v1455
  %v1457 = vmul.f32 %v33, %v1456
  %v1458 = vlaneseq
  %v1459 = vshrl.u32 %v1458, 7
  %v1460 = vsub.s32 0, %v1459
  %v1461 = vrot.slane %v1457, %v1460
  %v1462 = vmul.f32 %v1436, %v1461
  %v1463 = vmul.f32 %v1444, %v1457
  %v1465 = vrot.slane %v1463, 7
  %v1467 = vsub.f32 %v33, %v1465
  %v1468 = vlaneseq
  %v1469 = vshrl.u32 %v1468, 7
  %v1470 = vsub.s32 1, %v1469
  %v1471 = vrot.slane %v1467, %v1470
  %v1472 = vadd.f32 %v1462, %v1471
  %v1473 = vtanh.pop %v1472
  %1475 = vrot.lane.b32.xlu0 %v1473, 64
  %v1476 = vpop.permute.xlu0 %1475
  %v1478 = vmul.f32 %v1424, %v1476
  %1480 = vrot.lane.b32.xlu0 %v1478, 64
  %v1481 = vpop.permute.xlu0 %1480
  %s1483 = scalar_lea.vmem %s6, 48
  %1484 = vst.msk [vmem:[%s1483] sm:$0xff] %vm41, %v1481
  %1486 = vrot.lane.b32.xlu0 %v1436, 32
  %v1487 = vpop.permute.xlu0 %1486
  %1489 = vst.msk [vmem:[%s1483] sm:$0xff] %vm246, %v1487
  %s1490 = scalar_lea.vmem %s0, 56
  %v1491 = vld [vmem:[%s1490] sm:$0xff]
  %v1492 = vsel %vm41, %v1481, 0
  %1494 = vmatprep.subr.mxu0 0.0
  %1495 = vmatpush1.msra.mxu0 %v34
  %1496 = vmatprep.subr.mxu0 0.0
  %1497 = vmatpush1.msra.mxu0 %v35
  %1498 = vmatprep.subr.mxu0 0.0
  %1499 = vmatpush1.msra.mxu0 %v36
  %1500 = vmatprep.subr.mxu0 0.0
  %1501 = vmatpush1.msra.mxu0 %v37
  %1502 = vmatprep.subr.mxu0 0.0
  %1503 = vmatpush1.msra.mxu0 0.0
  %1504 = vmatprep.subr.mxu0 0.0
  %1505 = vmatpush1.msra.mxu0 0.0
  %1506 = vmatprep.subr.mxu0 0.0
  %1507 = vmatpush1.msra.mxu0 0.0
  %1508 = vmatprep.subr.mxu0 0.0
  %1509 = vmatpush1.msra.mxu0 0.0
  %1510 = vmatprep.subr.mxu0 0.0
  %1511 = vmatpush1.msra.mxu0 0.0
  %1512 = vmatprep.subr.mxu0 0.0
  %1513 = vmatpush1.msra.mxu0 0.0
  %1514 = vmatprep.subr.mxu0 0.0
  %1515 = vmatpush1.msra.mxu0 0.0
  %1516 = vmatprep.subr.mxu0 0.0
  %1517 = vmatpush1.msra.mxu0 0.0
  %1518 = vmatprep.subr.mxu0 0.0
  %1519 = vmatpush1.msra.mxu0 0.0
  %1520 = vmatprep.subr.mxu0 0.0
  %1521 = vmatpush1.msra.mxu0 0.0
  %1522 = vmatprep.subr.mxu0 0.0
  %1523 = vmatpush1.msra.mxu0 0.0
  %1524 = vmatprep.subr.mxu0 0.0
  %1525 = vmatpush1.msra.mxu0 0.0
  %1526 = vmatprep.subr.mxu0 0.0
  %1527 = vmatpush1.msra.mxu0 0.0
  %1528 = vmatprep.subr.mxu0 0.0
  %1529 = vmatpush1.msra.mxu0 0.0
  %1530 = vmatprep.subr.mxu0 0.0
  %1531 = vmatpush1.msra.mxu0 0.0
  %1532 = vmatprep.subr.mxu0 0.0
  %1533 = vmatpush1.msra.mxu0 0.0
  %1534 = vmatprep.subr.mxu0 0.0
  %1535 = vmatpush1.msra.mxu0 0.0
  %1536 = vmatprep.subr.mxu0 0.0
  %1537 = vmatpush1.msra.mxu0 0.0
  %1538 = vmatprep.subr.mxu0 0.0
  %1539 = vmatpush1.msra.mxu0 0.0
  %1540 = vmatprep.subr.mxu0 0.0
  %1541 = vmatpush1.msra.mxu0 0.0
  %1542 = vmatprep.subr.mxu0 0.0
  %1543 = vmatpush1.msra.mxu0 0.0
  %1544 = vmatprep.subr.mxu0 0.0
  %1545 = vmatpush1.msra.mxu0 0.0
  %1546 = vmatprep.subr.mxu0 0.0
  %1547 = vmatpush1.msra.mxu0 0.0
  %1548 = vmatprep.subr.mxu0 0.0
  %1549 = vmatpush1.msra.mxu0 0.0
  %1550 = vmatprep.subr.mxu0 0.0
  %1551 = vmatpush1.msra.mxu0 0.0
  %1552 = vmatprep.subr.mxu0 0.0
  %1553 = vmatpush1.msra.mxu0 0.0
  %1554 = vmatprep.subr.mxu0 0.0
  %1555 = vmatpush1.msra.mxu0 0.0
  %1556 = vmatprep.subr.mxu0 0.0
  %1557 = vmatpush1.msra.mxu0 0.0
  %1558 = vmatprep.mubr.f32.mxu0 0.0
  %1559 = vmatmul.mubr.f32.gmra.mrb[0].mxu0 %v1492
  %v1560 = vpop.f32.mrb[0].mxu0
  %v1561 = vadd.f32 0.0, %v1560
  %v1562 = vpop.f32.mrb[0].mxu0
  %1563 = vdwg.mxu0
  %v1564 = vrot.slane %v1491, 4
  %v1565 = vadd.f32 %v1491, %v1564
  %v1566 = vrot.slane %v1565, 2
  %v1567 = vadd.f32 %v1565, %v1566
  %v1568 = vrot.slane %v1567, 1
  %v1569 = vadd.f32 %v1567, %v1568
  %v1570 = vmul.f32 %v1569, 0.125
  %v1571 = vsub.f32 %v1491, %v1570
  %v1572 = vmul.f32 %v1571, %v1571
  %v1573 = vrot.slane %v1572, 4
  %v1574 = vadd.f32 %v1572, %v1573
  %v1575 = vrot.slane %v1574, 2
  %v1576 = vadd.f32 %v1574, %v1575
  %v1577 = vrot.slane %v1576, 1
  %v1578 = vadd.f32 %v1576, %v1577
  %v1579 = vmul.f32 %v1578, 0.125
  %v1580 = vadd.f32 %v1579, 1e-05
  %v1581 = vrsqrt.pop %v1580
  %v1582 = vmul.f32 %v32, %v1581
  %v1583 = vrot.slane %v1561, 4
  %v1584 = vadd.f32 %v1561, %v1583
  %v1585 = vrot.slane %v1584, 2
  %v1586 = vadd.f32 %v1584, %v1585
  %v1587 = vrot.slane %v1586, 1
  %v1588 = vadd.f32 %v1586, %v1587
  %v1589 = vmul.f32 %v1588, 0.125
  %v1590 = vsub.f32 %v1561, %v1589
  %v1591 = vmul.f32 %v1590, %v1590
  %v1592 = vrot.slane %v1591, 4
  %v1593 = vadd.f32 %v1591, %v1592
  %v1594 = vrot.slane %v1593, 2
  %v1595 = vadd.f32 %v1593, %v1594
  %v1596 = vrot.slane %v1595, 1
  %v1597 = vadd.f32 %v1595, %v1596
  %v1598 = vmul.f32 %v1597, 0.125
  %v1599 = vadd.f32 %v1598, 1e-05
  %v1600 = vrsqrt.pop %v1599
  %v1601 = vmul.f32 %v32, %v1600
  %v1602 = vmul.f32 %v1570, %v1582
  %v1604 = vrot.slane %v1602, 6
  %v1606 = vsub.f32 %v32, %v1604
  %v1607 = vmul.f32 %v1589, %v1601
  %v1609 = vrot.slane %v1607, 7
  %v1611 = vsub.f32 %v1606, %v1609
  %v1612 = vlaneseq
  %v1613 = vshrl.u32 %v1612, 7
  %v1614 = vsub.s32 0, %v1613
  %v1615 = vrot.slane %v1582, %v1614
  %v1616 = vmul.f32 %v1491, %v1615
  %v1617 = vlaneseq
  %v1618 = vshrl.u32 %v1617, 7
  %v1619 = vsub.s32 1, %v1618
  %v1620 = vrot.slane %v1601, %v1619
  %v1621 = vmul.f32 %v1561, %v1620
  %v1622 = vadd.f32 %v1616, %v1621
  %v1623 = vlaneseq
  %v1624 = vshrl.u32 %v1623, 7
  %v1625 = vsub.s32 2, %v1624
  %v1626 = vrot.slane %v1611, %v1625
  %v1627 = vadd.f32 %v1622, %v1626
  %v1628 = vmul.f32 %v1627, 0.5
  %v1629 = vtanh.pop %v1628
  %v1630 = vmul.f32 %v1629, 0.5
  %v1631 = vadd.f32 %v1630, 0.5
  %v1632 = vmul.f32 %v1631, %v1436
  %v1633 = vtanh.pop %v1627
  %1635 = vrot.lane.b32.xlu0 %v1633, 64
  %v1636 = vpop.permute.xlu0 %1635
  %v1638 = vmul.f32 %v1631, %v1636
  %1640 = vrot.lane.b32.xlu0 %v1638, 96
  %v1641 = vpop.permute.xlu0 %1640
  %v1643 = vadd.f32 %v1632, %v1641
  %v1644 = vsel %vm41, %v1643, 0.0
  %v1645 = vrot.slane %v1644, 4
  %v1646 = vadd.f32 %v1644, %v1645
  %v1647 = vrot.slane %v1646, 2
  %v1648 = vadd.f32 %v1646, %v1647
  %v1649 = vrot.slane %v1648, 1
  %v1650 = vadd.f32 %v1648, %v1649
  %v1651 = vmul.f32 %v1650, 0.125
  %v1652 = vsub.f32 %v1643, %v1651
  %v1653 = vmul.f32 %v1652, %v1652
  %v1654 = vsel %vm41, %v1653, 0.0
  %v1655 = vrot.slane %v1654, 4
  %v1656 = vadd.f32 %v1654, %v1655
  %v1657 = vrot.slane %v1656, 2
  %v1658 = vadd.f32 %v1656, %v1657
  %v1659 = vrot.slane %v1658, 1
  %v1660 = vadd.f32 %v1658, %v1659
  %v1661 = vmul.f32 %v1660, 0.125
  %v1662 = vadd.f32 %v1661, 1e-05
  %v1663 = vrsqrt.pop %v1662
  %v1664 = vmul.f32 %v33, %v1663
  %v1665 = vlaneseq
  %v1666 = vshrl.u32 %v1665, 7
  %v1667 = vsub.s32 0, %v1666
  %v1668 = vrot.slane %v1664, %v1667
  %v1669 = vmul.f32 %v1643, %v1668
  %v1670 = vmul.f32 %v1651, %v1664
  %v1672 = vrot.slane %v1670, 7
  %v1674 = vsub.f32 %v33, %v1672
  %v1675 = vlaneseq
  %v1676 = vshrl.u32 %v1675, 7
  %v1677 = vsub.s32 1, %v1676
  %v1678 = vrot.slane %v1674, %v1677
  %v1679 = vadd.f32 %v1669, %v1678
  %v1680 = vtanh.pop %v1679
  %1682 = vrot.lane.b32.xlu0 %v1680, 64
  %v1683 = vpop.permute.xlu0 %1682
  %v1685 = vmul.f32 %v1631, %v1683
  %1687 = vrot.lane.b32.xlu0 %v1685, 64
  %v1688 = vpop.permute.xlu0 %1687
  %s1690 = scalar_lea.vmem %s6, 56
  %1691 = vst.msk [vmem:[%s1690] sm:$0xff] %vm41, %v1688
  %1693 = vrot.lane.b32.xlu0 %v1643, 32
  %v1694 = vpop.permute.xlu0 %1693
  %1696 = vst.msk [vmem:[%s1690] sm:$0xff] %vm246, %v1694
  %1697 = vst.msk [vmem:[#allocation2] sm:$0xff] %vm41, %v1688
  %1698 = vst.msk [vmem:[#allocation3] sm:$0xff] %vm41, %v1643
  // Predicated region
  $region30: #{bnlstm_sequence.1} parent=0 // pred_check
    _
  $region31: #{bnlstm_sequence.1} parent=0 // pred_check_branch
    %1700 = sbr.rel (0) target = $region33
  $region32: #{bnlstm_sequence.1} parent=0 // pred_region
    _
  $region33: #{bnlstm_sequence.1} parent=0 // pred_fallthru
    _
  // Predicated region
  $region34: #{bnlstm_sequence.1} parent=0 // pred_check
    _
  $region35: #{bnlstm_sequence.1} parent=0 // pred_check_branch
    %1702 = sbr.rel (0) target = $region37
  $region36: #{bnlstm_sequence.1} parent=0 // pred_region
    _
  $region37: #{bnlstm_sequence.1} parent=0 // pred_fallthru
    _

</llo_original>
